<compile_context>
chip_gen: v7x
topology: tpu7x:2x2x1
jax: 0.10.0
libtpu: 0.0.40
codegen_flags: <defaults>
</compile_context>

<pallas_src>
import jax
import jax.numpy as jnp
from jax import lax
from jax.experimental import pallas as pl
from jax.experimental.pallas import tpu as pltpu


def _round_up(x, m):
    return ((x + m - 1) // m) * m


def _make_xception_kernel(W, b_tile, hwp, matmul_dtype):
    L = b_tile * hwp  # lanes per block

    def kernel(x_ref,      # (Cin, L)
               masks_ref,  # (4, L) f32 {0,1}: [h>=1, h<=H-2, w>=1, w<=W-2]
               wdw1_ref,   # (Cin, 9)     depthwise-1 taps (k = kh*3 + kw)
               wpw1_ref,   # (Cout, Cin)  pointwise-1, BN1 scale folded
               b1_ref,     # (Cout, 1)    BN1 shift
               wdw2_ref,   # (Cout, 9)
               wpw2_ref,   # (Cout, Cout) pointwise-2, BN2 scale folded
               b2_ref,     # (Cout, 1)    BN2 shift
               wres_ref,   # (Cout, Cin)  residual 1x1, BNr scale folded
               br_ref,     # (Cout, 1)    BNr shift
               out_ref):   # (Cout, L)
        masks = masks_ref[...]
        h_lo = masks[0:1, :] > 0.5   # reading row h-1 is valid
        h_hi = masks[1:2, :] > 0.5   # reading row h+1 is valid
        w_lo = masks[2:3, :] > 0.5   # reading col w-1 is valid
        w_hi = masks[3:4, :] > 0.5   # reading col w+1 is valid

        def shift(v, off):
            # out[:, j] = v[:, j + off]  (wrap; wraps are always masked out)
            s = (-off) % L
            return pltpu.roll(v, shift=s, axis=1) if s else v

        def col_taps(v, fill):
            # (v[.., w-1], v, v[.., w+1]) with `fill` outside the image width.
            left = jnp.where(w_lo, shift(v, -1), fill)
            right = jnp.where(w_hi, shift(v, +1), fill)
            return left, v, right

        def row_shift(v, oh, fill):
            if oh == 0:
                return v
            mask = h_lo if oh < 0 else h_hi
            return jnp.where(mask, shift(v, oh * W), fill)

        def depthwise3x3(v, w_ref):
            # Hierarchical: shared column taps -> per-row weighted sums ->
            # row shifts.  4 rolls + 4 selects total (vs 8 + 8 naive).
            w = w_ref[...].astype(jnp.float32)          # (C, 9)
            cl, cc, cr = col_taps(v, 0.0)
            acc = None
            for kh, oh in ((0, -1), (1, 0), (2, 1)):
                s = (cl * w[:, 3 * kh + 0:3 * kh + 1]
                     + cc * w[:, 3 * kh + 1:3 * kh + 2]
                     + cr * w[:, 3 * kh + 2:3 * kh + 3])
                s = row_shift(s, oh, 0.0)
                acc = s if acc is None else acc + s
            return acc

        def matmul(w_ref, v):
            return jnp.dot(w_ref[...], v.astype(matmul_dtype),
                           preferred_element_type=jnp.float32)

        x = x_ref[...].astype(jnp.float32)               # (Cin, L)

        # ---- main branch: SeparableConv2D -> BN -> ReLU ----
        h = depthwise3x3(x, wdw1_ref)                    # (Cin, L)
        h = matmul(wpw1_ref, h) + b1_ref[...]            # (Cout, L)
        h = jnp.maximum(h, 0.0)

        # ---- SeparableConv2D -> BN ----
        h = depthwise3x3(h, wdw2_ref)                    # (Cout, L)
        h = matmul(wpw2_ref, h) + b2_ref[...]

        # ---- MaxPool2d(3, stride=1, pad=1), separable, -inf padding ----
        neg_inf = jnp.float32(-jnp.inf)
        cl, cc, cr = col_taps(h, neg_inf)
        ym = jnp.maximum(jnp.maximum(cl, cr), cc)
        mp = jnp.maximum(jnp.maximum(row_shift(ym, -1, neg_inf),
                                     row_shift(ym, +1, neg_inf)), ym)

        # ---- residual branch computed last (smaller live set, Cout > Cin) ----
        res = matmul(wres_ref, x) + br_ref[...]          # (Cout, L)

        out_ref[...] = (mp + res).astype(out_ref.dtype)

    return kernel


def _bn_affine(gamma, beta, mean, var, eps=1e-5):
    scale = (gamma / jnp.sqrt(var + eps)).astype(jnp.float32)
    shift = (beta - mean * scale).astype(jnp.float32)
    return scale, shift


def residual_xception_block(x_nchw, params, *, matmul_dtype=jnp.float32,
                            lane_budget=8 * 1024):
    """x_nchw: (N, Cin, H, W) float32 -> (N, Cout, H, W) float32."""
    N, Cin, H, W = x_nchw.shape
    Cout = params["wpw1"].shape[1]
    HW = H * W
    HWp = _round_up(HW, 128)          # lane-dense / unmasked stores

    # Pack B_TILE images per grid step: largest divisor of N within the budget.
    max_b = max(1, lane_budget // HWp)
    b_tile = 1
    for d in range(1, N + 1):
        if N % d == 0 and d <= max_b:
            b_tile = d
    L = b_tile * HWp
    n_tiles = N // b_tile

    bn1_s, bn1_b = _bn_affine(*params["bn1"])
    bn2_s, bn2_b = _bn_affine(*params["bn2"])
    bnr_s, bnr_b = _bn_affine(*params["bnr"])

    # Host-side weight prep: transpose 1x1 weights to (Cout, Cin), fold BN
    # scales; keep the shifts as (Cout, 1) biases.  Depthwise taps stay f32.
    wdw1_t = params["wdw1"].T.astype(jnp.float32)                       # (Cin, 9)
    wdw2_t = params["wdw2"].T.astype(jnp.float32)                       # (Cout, 9)
    wpw1_t = (params["wpw1"].T * bn1_s[:, None]).astype(matmul_dtype)   # (Cout, Cin)
    wpw2_t = (params["wpw2"].T * bn2_s[:, None]).astype(matmul_dtype)   # (Cout, Cout)
    wres_t = (params["wres"].T * bnr_s[:, None]).astype(matmul_dtype)   # (Cout, Cin)
    b1 = bn1_b.reshape(Cout, 1)
    b2 = bn2_b.reshape(Cout, 1)
    br = bnr_b.reshape(Cout, 1)

    # Pack images along the lane axis: (N, Cin, HW) -> (Cin, N, HWp) -> (Cin, N*HWp)
    x_cn = jnp.transpose(x_nchw.reshape(N, Cin, HW), (1, 0, 2)).astype(jnp.float32)
    if HWp != HW:
        x_cn = jnp.pad(x_cn, ((0, 0), (0, 0), (0, HWp - HW)))
    x_flat = x_cn.reshape(Cin, N * HWp)

    # Precomputed boundary masks for one lane block (pattern repeats per step).
    p = jnp.arange(L, dtype=jnp.int32) % HWp
    h_idx = p // W
    w_idx = p % W
    valid = p < HW
    masks = jnp.stack([
        valid & (h_idx >= 1),
        valid & (h_idx <= H - 2),
        valid & (w_idx >= 1),
        valid & (w_idx <= W - 2),
    ]).astype(jnp.float32)                                              # (4, L)

    def inv_spec(shape):
        nd = len(shape)
        return pl.BlockSpec(shape, lambda b, _n=nd: (0,) * _n)

    out_flat = pl.pallas_call(
        _make_xception_kernel(W, b_tile, HWp, matmul_dtype),
        out_shape=jax.ShapeDtypeStruct((Cout, N * HWp), jnp.float32),
        grid_spec=pltpu.PrefetchScalarGridSpec(
            num_scalar_prefetch=0,
            grid=(n_tiles,),
            in_specs=[
                pl.BlockSpec((Cin, L), lambda b: (0, b)),   # x (packed images)
                inv_spec((4, L)),         # masks
                inv_spec((Cin, 9)),       # wdw1
                inv_spec((Cout, Cin)),    # wpw1
                inv_spec((Cout, 1)),      # b1
                inv_spec((Cout, 9)),      # wdw2
                inv_spec((Cout, Cout)),   # wpw2
                inv_spec((Cout, 1)),      # b2
                inv_spec((Cout, Cin)),    # wres
                inv_spec((Cout, 1)),      # br
            ],
            out_specs=pl.BlockSpec((Cout, L), lambda b: (0, b)),
        ),
        compiler_params=pltpu.CompilerParams(
            # Batch tiles are independent -> shard across v7x's 2 TensorCores.
            dimension_semantics=("parallel",)),
    )(x_flat, masks, wdw1_t, wpw1_t, b1, wdw2_t, wpw2_t, b2, wres_t, br)

    out = out_flat.reshape(Cout, N, HWp)[:, :, :HW]
    return jnp.transpose(out, (1, 0, 2)).reshape(N, Cout, H, W)


def reference(x_nchw, params):
    """Pure-JAX reference (NHWC convs via lax) mirroring the PyTorch forward."""
    dn = ("NHWC", "HWIO", "NHWC")
    x = jnp.transpose(x_nchw, (0, 2, 3, 1)).astype(jnp.float32)
    Cin = x.shape[-1]
    Cout = params["wpw1"].shape[1]
    eps = 1e-5

    def bn(y, gamma, beta, mean, var):
        return (y - mean) / jnp.sqrt(var + eps) * gamma + beta

    wdw1 = params["wdw1"].reshape(3, 3, 1, Cin)
    wdw2 = params["wdw2"].reshape(3, 3, 1, Cout)
    wpw1 = params["wpw1"].reshape(1, 1, Cin, Cout)
    wpw2 = params["wpw2"].reshape(1, 1, Cout, Cout)
    wres = params["wres"].reshape(1, 1, Cin, Cout)

    res = lax.conv_general_dilated(x, wres, (1, 1), "VALID",
                                   dimension_numbers=dn)
    res = bn(res, *params["bnr"])

    h = lax.conv_general_dilated(x, wdw1, (1, 1), ((1, 1), (1, 1)),
                                 dimension_numbers=dn, feature_group_count=Cin)
    h = lax.conv_general_dilated(h, wpw1, (1, 1), "VALID",
                                 dimension_numbers=dn)
    h = jnp.maximum(bn(h, *params["bn1"]), 0.0)

    h = lax.conv_general_dilated(h, wdw2, (1, 1), ((1, 1), (1, 1)),
                                 dimension_numbers=dn, feature_group_count=Cout)
    h = lax.conv_general_dilated(h, wpw2, (1, 1), "VALID",
                                 dimension_numbers=dn)
    h = bn(h, *params["bn2"])

    h = lax.reduce_window(h, -jnp.inf, lax.max, (1, 3, 3, 1), (1, 1, 1, 1),
                          ((0, 0), (1, 1), (1, 1), (0, 0)))
    return jnp.transpose(h + res, (0, 3, 1, 2))


def make_params(key, c_in, c_out):
    ks = jax.random.split(key, 20)

    def nrm(k, shape, s=0.1):
        return (jax.random.normal(k, shape) * s).astype(jnp.float32)

    def bn_params(k0, k1, k2, k3, c):
        gamma = 1.0 + nrm(k0, (c,))
        beta = nrm(k1, (c,))
        mean = nrm(k2, (c,))
        var = 0.5 + jax.random.uniform(k3, (c,), dtype=jnp.float32)
        return (gamma, beta, mean, var)

    return {
        "wdw1": nrm(ks[0], (9, c_in)),
        "wpw1": nrm(ks[1], (c_in, c_out)),
        "wdw2": nrm(ks[2], (9, c_out)),
        "wpw2": nrm(ks[3], (c_out, c_out)),
        "wres": nrm(ks[4], (c_in, c_out)),
        "bn1": bn_params(ks[5], ks[6], ks[7], ks[8], c_out),
        "bn2": bn_params(ks[9], ks[10], ks[11], ks[12], c_out),
        "bnr": bn_params(ks[13], ks[14], ks[15], ks[16], c_out),
    }


if __name__ == "__main__":
    N, C_IN, C_OUT, H, W = 2, 4, 8, 16, 16
    key = jax.random.PRNGKey(0)
    k_x, k_p = jax.random.split(key)
    x = jax.random.normal(k_x, (N, C_IN, H, W), dtype=jnp.float32)
    params = make_params(k_p, C_IN, C_OUT)

    ref = reference(x, params)

    # f32 MXU operands (default; tight tolerance vs the pure-JAX reference).
    out = jax.block_until_ready(residual_xception_block(x, params))
    assert out.shape == (N, C_OUT, H, W)
    assert jnp.allclose(out, ref, atol=1e-4, rtol=1e-4), (
        float(jnp.max(jnp.abs(out - ref))))

    # bf16 MXU operands (production v6e/v7x fast path; f32 accumulation).
    out_bf16 = jax.block_until_ready(
        residual_xception_block(x, params, matmul_dtype=jnp.bfloat16))
    assert float(jnp.max(jnp.abs(out_bf16 - ref))) < 5e-2

    print("KERNEL_OK")
</pallas_src>

<mosaic_0001>
module attributes {stable_mosaic.version = 11 : i64} {
  func.func @kernel(%arg0: i32, %arg1: memref<4x512xf32, #tpu.memory_space<vmem>>, %arg2: memref<4x512xf32, #tpu.memory_space<vmem>>, %arg3: memref<4x9xf32, #tpu.memory_space<vmem>>, %arg4: memref<8x4xf32, #tpu.memory_space<vmem>>, %arg5: memref<8x1xf32, #tpu.memory_space<vmem>>, %arg6: memref<8x9xf32, #tpu.memory_space<vmem>>, %arg7: memref<8x8xf32, #tpu.memory_space<vmem>>, %arg8: memref<8x1xf32, #tpu.memory_space<vmem>>, %arg9: memref<8x4xf32, #tpu.memory_space<vmem>>, %arg10: memref<8x1xf32, #tpu.memory_space<vmem>>, %arg11: memref<8x512xf32, #tpu.memory_space<vmem>>) attributes {dimension_semantics = [#tpu.dimension_semantics<parallel>], iteration_bounds = array<i64: 1>, scalar_prefetch = 0 : i64, scratch_operands = 0 : i64, tpu.core_type = #tpu.core_type<tc>, window_params = [{transform_indices = @transform_0, window_bounds = array<i64: 4, 512>}, {pipeline_mode = #tpu.pipeline_mode<synchronous>, transform_indices = @transform_1, window_bounds = array<i64: 4, 512>}, {pipeline_mode = #tpu.pipeline_mode<synchronous>, transform_indices = @transform_2, window_bounds = array<i64: 4, 9>}, {pipeline_mode = #tpu.pipeline_mode<synchronous>, transform_indices = @transform_3, window_bounds = array<i64: 8, 4>}, {pipeline_mode = #tpu.pipeline_mode<synchronous>, transform_indices = @transform_4, window_bounds = array<i64: 8, 1>}, {pipeline_mode = #tpu.pipeline_mode<synchronous>, transform_indices = @transform_5, window_bounds = array<i64: 8, 9>}, {pipeline_mode = #tpu.pipeline_mode<synchronous>, transform_indices = @transform_6, window_bounds = array<i64: 8, 8>}, {pipeline_mode = #tpu.pipeline_mode<synchronous>, transform_indices = @transform_7, window_bounds = array<i64: 8, 1>}, {pipeline_mode = #tpu.pipeline_mode<synchronous>, transform_indices = @transform_8, window_bounds = array<i64: 8, 4>}, {pipeline_mode = #tpu.pipeline_mode<synchronous>, transform_indices = @transform_9, window_bounds = array<i64: 8, 1>}, {transform_indices = @transform_10, window_bounds = array<i64: 8, 512>}]} {
    %c0 = arith.constant 0 : index
    %c0_0 = arith.constant 0 : index
    %0 = vector.load %arg2[%c0, %c0_0] : memref<4x512xf32, #tpu.memory_space<vmem>>, vector<4x512xf32>
    %1 = vector.extract_strided_slice %0 {offsets = [0, 0], sizes = [1, 512], strides = [1, 1]} : vector<4x512xf32> to vector<1x512xf32>
    %cst = arith.constant 5.000000e-01 : f32
    %2 = vector.broadcast %cst : f32 to vector<1x512xf32>
    %3 = arith.cmpf ogt, %1, %2 : vector<1x512xf32>
    %4 = vector.extract_strided_slice %0 {offsets = [1, 0], sizes = [1, 512], strides = [1, 1]} : vector<4x512xf32> to vector<1x512xf32>
    %cst_1 = arith.constant 5.000000e-01 : f32
    %5 = vector.broadcast %cst_1 : f32 to vector<1x512xf32>
    %6 = arith.cmpf ogt, %4, %5 : vector<1x512xf32>
    %7 = vector.extract_strided_slice %0 {offsets = [2, 0], sizes = [1, 512], strides = [1, 1]} : vector<4x512xf32> to vector<1x512xf32>
    %cst_2 = arith.constant 5.000000e-01 : f32
    %8 = vector.broadcast %cst_2 : f32 to vector<1x512xf32>
    %9 = arith.cmpf ogt, %7, %8 : vector<1x512xf32>
    %10 = vector.extract_strided_slice %0 {offsets = [3, 0], sizes = [1, 512], strides = [1, 1]} : vector<4x512xf32> to vector<1x512xf32>
    %cst_3 = arith.constant 5.000000e-01 : f32
    %11 = vector.broadcast %cst_3 : f32 to vector<1x512xf32>
    %12 = arith.cmpf ogt, %10, %11 : vector<1x512xf32>
    %c0_4 = arith.constant 0 : index
    %c0_5 = arith.constant 0 : index
    %13 = vector.load %arg1[%c0_4, %c0_5] : memref<4x512xf32, #tpu.memory_space<vmem>>, vector<4x512xf32>
    %c0_6 = arith.constant 0 : index
    %c0_7 = arith.constant 0 : index
    %14 = vector.load %arg3[%c0_6, %c0_7] : memref<4x9xf32, #tpu.memory_space<vmem>>, vector<4x9xf32>
    %c1_i32 = arith.constant 1 : i32
    %15 = tpu.dynamic_rotate %13 by %c1_i32 dim 1 : vector<4x512xf32>, i32 -> vector<4x512xf32>
    %cst_8 = arith.constant 0.000000e+00 : f32
    %16 = vector.shape_cast %9 : vector<1x512xi1> to vector<1x512xi1>
    %17 = vector.broadcast %16 : vector<1x512xi1> to vector<4x512xi1>
    %18 = vector.broadcast %cst_8 : f32 to vector<4x512xf32>
    %19 = arith.select %17, %15, %18 : vector<4x512xi1>, vector<4x512xf32>
    %c511_i32 = arith.constant 511 : i32
    %20 = tpu.dynamic_rotate %13 by %c511_i32 dim 1 : vector<4x512xf32>, i32 -> vector<4x512xf32>
    %cst_9 = arith.constant 0.000000e+00 : f32
    %21 = vector.shape_cast %12 : vector<1x512xi1> to vector<1x512xi1>
    %22 = vector.broadcast %21 : vector<1x512xi1> to vector<4x512xi1>
    %23 = vector.broadcast %cst_9 : f32 to vector<4x512xf32>
    %24 = arith.select %22, %20, %23 : vector<4x512xi1>, vector<4x512xf32>
    %25 = vector.extract_strided_slice %14 {offsets = [0, 0], sizes = [4, 1], strides = [1, 1]} : vector<4x9xf32> to vector<4x1xf32>
    %26 = vector.broadcast %25 : vector<4x1xf32> to vector<4x512xf32>
    %27 = arith.mulf %19, %26 : vector<4x512xf32>
    %28 = vector.extract_strided_slice %14 {offsets = [0, 1], sizes = [4, 1], strides = [1, 1]} : vector<4x9xf32> to vector<4x1xf32>
    %29 = vector.broadcast %28 : vector<4x1xf32> to vector<4x512xf32>
    %30 = arith.mulf %13, %29 : vector<4x512xf32>
    %31 = arith.addf %27, %30 : vector<4x512xf32>
    %32 = vector.extract_strided_slice %14 {offsets = [0, 2], sizes = [4, 1], strides = [1, 1]} : vector<4x9xf32> to vector<4x1xf32>
    %33 = vector.broadcast %32 : vector<4x1xf32> to vector<4x512xf32>
    %34 = arith.mulf %24, %33 : vector<4x512xf32>
    %35 = arith.addf %31, %34 : vector<4x512xf32>
    %c16_i32 = arith.constant 16 : i32
    %36 = tpu.dynamic_rotate %35 by %c16_i32 dim 1 : vector<4x512xf32>, i32 -> vector<4x512xf32>
    %cst_10 = arith.constant 0.000000e+00 : f32
    %37 = vector.shape_cast %3 : vector<1x512xi1> to vector<1x512xi1>
    %38 = vector.broadcast %37 : vector<1x512xi1> to vector<4x512xi1>
    %39 = vector.broadcast %cst_10 : f32 to vector<4x512xf32>
    %40 = arith.select %38, %36, %39 : vector<4x512xi1>, vector<4x512xf32>
    %41 = vector.extract_strided_slice %14 {offsets = [0, 3], sizes = [4, 1], strides = [1, 1]} : vector<4x9xf32> to vector<4x1xf32>
    %42 = vector.broadcast %41 : vector<4x1xf32> to vector<4x512xf32>
    %43 = arith.mulf %19, %42 : vector<4x512xf32>
    %44 = vector.extract_strided_slice %14 {offsets = [0, 4], sizes = [4, 1], strides = [1, 1]} : vector<4x9xf32> to vector<4x1xf32>
    %45 = vector.broadcast %44 : vector<4x1xf32> to vector<4x512xf32>
    %46 = arith.mulf %13, %45 : vector<4x512xf32>
    %47 = arith.addf %43, %46 : vector<4x512xf32>
    %48 = vector.extract_strided_slice %14 {offsets = [0, 5], sizes = [4, 1], strides = [1, 1]} : vector<4x9xf32> to vector<4x1xf32>
    %49 = vector.broadcast %48 : vector<4x1xf32> to vector<4x512xf32>
    %50 = arith.mulf %24, %49 : vector<4x512xf32>
    %51 = arith.addf %47, %50 : vector<4x512xf32>
    %52 = arith.addf %40, %51 : vector<4x512xf32>
    %53 = vector.extract_strided_slice %14 {offsets = [0, 6], sizes = [4, 1], strides = [1, 1]} : vector<4x9xf32> to vector<4x1xf32>
    %54 = vector.broadcast %53 : vector<4x1xf32> to vector<4x512xf32>
    %55 = arith.mulf %19, %54 : vector<4x512xf32>
    %56 = vector.extract_strided_slice %14 {offsets = [0, 7], sizes = [4, 1], strides = [1, 1]} : vector<4x9xf32> to vector<4x1xf32>
    %57 = vector.broadcast %56 : vector<4x1xf32> to vector<4x512xf32>
    %58 = arith.mulf %13, %57 : vector<4x512xf32>
    %59 = arith.addf %55, %58 : vector<4x512xf32>
    %60 = vector.extract_strided_slice %14 {offsets = [0, 8], sizes = [4, 1], strides = [1, 1]} : vector<4x9xf32> to vector<4x1xf32>
    %61 = vector.broadcast %60 : vector<4x1xf32> to vector<4x512xf32>
    %62 = arith.mulf %24, %61 : vector<4x512xf32>
    %63 = arith.addf %59, %62 : vector<4x512xf32>
    %c496_i32 = arith.constant 496 : i32
    %64 = tpu.dynamic_rotate %63 by %c496_i32 dim 1 : vector<4x512xf32>, i32 -> vector<4x512xf32>
    %cst_11 = arith.constant 0.000000e+00 : f32
    %65 = vector.shape_cast %6 : vector<1x512xi1> to vector<1x512xi1>
    %66 = vector.broadcast %65 : vector<1x512xi1> to vector<4x512xi1>
    %67 = vector.broadcast %cst_11 : f32 to vector<4x512xf32>
    %68 = arith.select %66, %64, %67 : vector<4x512xi1>, vector<4x512xf32>
    %69 = arith.addf %52, %68 : vector<4x512xf32>
    %c0_12 = arith.constant 0 : index
    %c0_13 = arith.constant 0 : index
    %70 = vector.load %arg4[%c0_12, %c0_13] : memref<8x4xf32, #tpu.memory_space<vmem>>, vector<8x4xf32>
    %cst_14 = arith.constant dense<0.000000e+00> : vector<8x512xf32>
    %71 = tpu.matmul %70, %69, %cst_14 {dimension_numbers = #tpu.dot_dimension_numbers<[1], [0], [0], [1], [0, 0, 1, 1], [], []>} : vector<8x4xf32>, vector<4x512xf32>, vector<8x512xf32> -> vector<8x512xf32>
    %c0_15 = arith.constant 0 : index
    %c0_16 = arith.constant 0 : index
    %72 = vector.load %arg5[%c0_15, %c0_16] : memref<8x1xf32, #tpu.memory_space<vmem>>, vector<8x1xf32>
    %73 = vector.broadcast %72 : vector<8x1xf32> to vector<8x512xf32>
    %74 = arith.addf %71, %73 : vector<8x512xf32>
    %cst_17 = arith.constant 0.000000e+00 : f32
    %75 = vector.broadcast %cst_17 : f32 to vector<8x512xf32>
    %76 = arith.maximumf %74, %75 : vector<8x512xf32>
    %c0_18 = arith.constant 0 : index
    %c0_19 = arith.constant 0 : index
    %77 = vector.load %arg6[%c0_18, %c0_19] : memref<8x9xf32, #tpu.memory_space<vmem>>, vector<8x9xf32>
    %c1_i32_20 = arith.constant 1 : i32
    %78 = tpu.dynamic_rotate %76 by %c1_i32_20 dim 1 : vector<8x512xf32>, i32 -> vector<8x512xf32>
    %cst_21 = arith.constant 0.000000e+00 : f32
    %79 = vector.shape_cast %9 : vector<1x512xi1> to vector<1x512xi1>
    %80 = vector.broadcast %79 : vector<1x512xi1> to vector<8x512xi1>
    %81 = vector.broadcast %cst_21 : f32 to vector<8x512xf32>
    %82 = arith.select %80, %78, %81 : vector<8x512xi1>, vector<8x512xf32>
    %c511_i32_22 = arith.constant 511 : i32
    %83 = tpu.dynamic_rotate %76 by %c511_i32_22 dim 1 : vector<8x512xf32>, i32 -> vector<8x512xf32>
    %cst_23 = arith.constant 0.000000e+00 : f32
    %84 = vector.shape_cast %12 : vector<1x512xi1> to vector<1x512xi1>
    %85 = vector.broadcast %84 : vector<1x512xi1> to vector<8x512xi1>
    %86 = vector.broadcast %cst_23 : f32 to vector<8x512xf32>
    %87 = arith.select %85, %83, %86 : vector<8x512xi1>, vector<8x512xf32>
    %88 = vector.extract_strided_slice %77 {offsets = [0, 0], sizes = [8, 1], strides = [1, 1]} : vector<8x9xf32> to vector<8x1xf32>
    %89 = vector.broadcast %88 : vector<8x1xf32> to vector<8x512xf32>
    %90 = arith.mulf %82, %89 : vector<8x512xf32>
    %91 = vector.extract_strided_slice %77 {offsets = [0, 1], sizes = [8, 1], strides = [1, 1]} : vector<8x9xf32> to vector<8x1xf32>
    %92 = vector.broadcast %91 : vector<8x1xf32> to vector<8x512xf32>
    %93 = arith.mulf %76, %92 : vector<8x512xf32>
    %94 = arith.addf %90, %93 : vector<8x512xf32>
    %95 = vector.extract_strided_slice %77 {offsets = [0, 2], sizes = [8, 1], strides = [1, 1]} : vector<8x9xf32> to vector<8x1xf32>
    %96 = vector.broadcast %95 : vector<8x1xf32> to vector<8x512xf32>
    %97 = arith.mulf %87, %96 : vector<8x512xf32>
    %98 = arith.addf %94, %97 : vector<8x512xf32>
    %c16_i32_24 = arith.constant 16 : i32
    %99 = tpu.dynamic_rotate %98 by %c16_i32_24 dim 1 : vector<8x512xf32>, i32 -> vector<8x512xf32>
    %cst_25 = arith.constant 0.000000e+00 : f32
    %100 = vector.shape_cast %3 : vector<1x512xi1> to vector<1x512xi1>
    %101 = vector.broadcast %100 : vector<1x512xi1> to vector<8x512xi1>
    %102 = vector.broadcast %cst_25 : f32 to vector<8x512xf32>
    %103 = arith.select %101, %99, %102 : vector<8x512xi1>, vector<8x512xf32>
    %104 = vector.extract_strided_slice %77 {offsets = [0, 3], sizes = [8, 1], strides = [1, 1]} : vector<8x9xf32> to vector<8x1xf32>
    %105 = vector.broadcast %104 : vector<8x1xf32> to vector<8x512xf32>
    %106 = arith.mulf %82, %105 : vector<8x512xf32>
    %107 = vector.extract_strided_slice %77 {offsets = [0, 4], sizes = [8, 1], strides = [1, 1]} : vector<8x9xf32> to vector<8x1xf32>
    %108 = vector.broadcast %107 : vector<8x1xf32> to vector<8x512xf32>
    %109 = arith.mulf %76, %108 : vector<8x512xf32>
    %110 = arith.addf %106, %109 : vector<8x512xf32>
    %111 = vector.extract_strided_slice %77 {offsets = [0, 5], sizes = [8, 1], strides = [1, 1]} : vector<8x9xf32> to vector<8x1xf32>
    %112 = vector.broadcast %111 : vector<8x1xf32> to vector<8x512xf32>
    %113 = arith.mulf %87, %112 : vector<8x512xf32>
    %114 = arith.addf %110, %113 : vector<8x512xf32>
    %115 = arith.addf %103, %114 : vector<8x512xf32>
    %116 = vector.extract_strided_slice %77 {offsets = [0, 6], sizes = [8, 1], strides = [1, 1]} : vector<8x9xf32> to vector<8x1xf32>
    %117 = vector.broadcast %116 : vector<8x1xf32> to vector<8x512xf32>
    %118 = arith.mulf %82, %117 : vector<8x512xf32>
    %119 = vector.extract_strided_slice %77 {offsets = [0, 7], sizes = [8, 1], strides = [1, 1]} : vector<8x9xf32> to vector<8x1xf32>
    %120 = vector.broadcast %119 : vector<8x1xf32> to vector<8x512xf32>
    %121 = arith.mulf %76, %120 : vector<8x512xf32>
    %122 = arith.addf %118, %121 : vector<8x512xf32>
    %123 = vector.extract_strided_slice %77 {offsets = [0, 8], sizes = [8, 1], strides = [1, 1]} : vector<8x9xf32> to vector<8x1xf32>
    %124 = vector.broadcast %123 : vector<8x1xf32> to vector<8x512xf32>
    %125 = arith.mulf %87, %124 : vector<8x512xf32>
    %126 = arith.addf %122, %125 : vector<8x512xf32>
    %c496_i32_26 = arith.constant 496 : i32
    %127 = tpu.dynamic_rotate %126 by %c496_i32_26 dim 1 : vector<8x512xf32>, i32 -> vector<8x512xf32>
    %cst_27 = arith.constant 0.000000e+00 : f32
    %128 = vector.shape_cast %6 : vector<1x512xi1> to vector<1x512xi1>
    %129 = vector.broadcast %128 : vector<1x512xi1> to vector<8x512xi1>
    %130 = vector.broadcast %cst_27 : f32 to vector<8x512xf32>
    %131 = arith.select %129, %127, %130 : vector<8x512xi1>, vector<8x512xf32>
    %132 = arith.addf %115, %131 : vector<8x512xf32>
    %c0_28 = arith.constant 0 : index
    %c0_29 = arith.constant 0 : index
    %133 = vector.load %arg7[%c0_28, %c0_29] : memref<8x8xf32, #tpu.memory_space<vmem>>, vector<8x8xf32>
    %cst_30 = arith.constant dense<0.000000e+00> : vector<8x512xf32>
    %134 = tpu.matmul %133, %132, %cst_30 {dimension_numbers = #tpu.dot_dimension_numbers<[1], [0], [0], [1], [0, 0, 1, 1], [], []>} : vector<8x8xf32>, vector<8x512xf32>, vector<8x512xf32> -> vector<8x512xf32>
    %c0_31 = arith.constant 0 : index
    %c0_32 = arith.constant 0 : index
    %135 = vector.load %arg8[%c0_31, %c0_32] : memref<8x1xf32, #tpu.memory_space<vmem>>, vector<8x1xf32>
    %136 = vector.broadcast %135 : vector<8x1xf32> to vector<8x512xf32>
    %137 = arith.addf %134, %136 : vector<8x512xf32>
    %c1_i32_33 = arith.constant 1 : i32
    %138 = tpu.dynamic_rotate %137 by %c1_i32_33 dim 1 : vector<8x512xf32>, i32 -> vector<8x512xf32>
    %cst_34 = arith.constant 0xFF800000 : f32
    %139 = vector.shape_cast %9 : vector<1x512xi1> to vector<1x512xi1>
    %140 = vector.broadcast %139 : vector<1x512xi1> to vector<8x512xi1>
    %141 = vector.broadcast %cst_34 : f32 to vector<8x512xf32>
    %142 = arith.select %140, %138, %141 : vector<8x512xi1>, vector<8x512xf32>
    %c511_i32_35 = arith.constant 511 : i32
    %143 = tpu.dynamic_rotate %137 by %c511_i32_35 dim 1 : vector<8x512xf32>, i32 -> vector<8x512xf32>
    %cst_36 = arith.constant 0xFF800000 : f32
    %144 = vector.shape_cast %12 : vector<1x512xi1> to vector<1x512xi1>
    %145 = vector.broadcast %144 : vector<1x512xi1> to vector<8x512xi1>
    %146 = vector.broadcast %cst_36 : f32 to vector<8x512xf32>
    %147 = arith.select %145, %143, %146 : vector<8x512xi1>, vector<8x512xf32>
    %148 = arith.maximumf %142, %147 : vector<8x512xf32>
    %149 = arith.maximumf %148, %137 : vector<8x512xf32>
    %c16_i32_37 = arith.constant 16 : i32
    %150 = tpu.dynamic_rotate %149 by %c16_i32_37 dim 1 : vector<8x512xf32>, i32 -> vector<8x512xf32>
    %cst_38 = arith.constant 0xFF800000 : f32
    %151 = vector.shape_cast %3 : vector<1x512xi1> to vector<1x512xi1>
    %152 = vector.broadcast %151 : vector<1x512xi1> to vector<8x512xi1>
    %153 = vector.broadcast %cst_38 : f32 to vector<8x512xf32>
    %154 = arith.select %152, %150, %153 : vector<8x512xi1>, vector<8x512xf32>
    %c496_i32_39 = arith.constant 496 : i32
    %155 = tpu.dynamic_rotate %149 by %c496_i32_39 dim 1 : vector<8x512xf32>, i32 -> vector<8x512xf32>
    %cst_40 = arith.constant 0xFF800000 : f32
    %156 = vector.shape_cast %6 : vector<1x512xi1> to vector<1x512xi1>
    %157 = vector.broadcast %156 : vector<1x512xi1> to vector<8x512xi1>
    %158 = vector.broadcast %cst_40 : f32 to vector<8x512xf32>
    %159 = arith.select %157, %155, %158 : vector<8x512xi1>, vector<8x512xf32>
    %160 = arith.maximumf %154, %159 : vector<8x512xf32>
    %161 = arith.maximumf %160, %149 : vector<8x512xf32>
    %c0_41 = arith.constant 0 : index
    %c0_42 = arith.constant 0 : index
    %162 = vector.load %arg9[%c0_41, %c0_42] : memref<8x4xf32, #tpu.memory_space<vmem>>, vector<8x4xf32>
    %cst_43 = arith.constant dense<0.000000e+00> : vector<8x512xf32>
    %163 = tpu.matmul %162, %13, %cst_43 {dimension_numbers = #tpu.dot_dimension_numbers<[1], [0], [0], [1], [0, 0, 1, 1], [], []>} : vector<8x4xf32>, vector<4x512xf32>, vector<8x512xf32> -> vector<8x512xf32>
    %c0_44 = arith.constant 0 : index
    %c0_45 = arith.constant 0 : index
    %164 = vector.load %arg10[%c0_44, %c0_45] : memref<8x1xf32, #tpu.memory_space<vmem>>, vector<8x1xf32>
    %165 = vector.broadcast %164 : vector<8x1xf32> to vector<8x512xf32>
    %166 = arith.addf %163, %165 : vector<8x512xf32>
    %167 = arith.addf %161, %166 : vector<8x512xf32>
    %c0_46 = arith.constant 0 : index
    %c0_47 = arith.constant 0 : index
    %168 = vector.load %arg11[%c0_46, %c0_47] : memref<8x512xf32, #tpu.memory_space<vmem>>, vector<8x512xf32>
    tpu.vector_store %arg11[%c0_46, %c0_47], %167 {strides = array<i32>} : memref<8x512xf32, #tpu.memory_space<vmem>>, vector<8x512xf32>,
    return
  }
  func.func @transform_0(%arg0: i32) -> (i32, i32) {
    %c0_i32 = arith.constant 0 : i32
    %c0_i32_0 = arith.constant 0 : i32
    return %c0_i32, %arg0 : i32, i32
  }
  func.func @transform_1(%arg0: i32) -> (i32, i32) {
    %c0_i32 = arith.constant 0 : i32
    %c0_i32_0 = arith.constant 0 : i32
    %c0_i32_1 = arith.constant 0 : i32
    return %c0_i32, %c0_i32_0 : i32, i32
  }
  func.func @transform_2(%arg0: i32) -> (i32, i32) {
    %c0_i32 = arith.constant 0 : i32
    %c0_i32_0 = arith.constant 0 : i32
    %c0_i32_1 = arith.constant 0 : i32
    return %c0_i32, %c0_i32_0 : i32, i32
  }
  func.func @transform_3(%arg0: i32) -> (i32, i32) {
    %c0_i32 = arith.constant 0 : i32
    %c0_i32_0 = arith.constant 0 : i32
    %c0_i32_1 = arith.constant 0 : i32
    return %c0_i32, %c0_i32_0 : i32, i32
  }
  func.func @transform_4(%arg0: i32) -> (i32, i32) {
    %c0_i32 = arith.constant 0 : i32
    %c0_i32_0 = arith.constant 0 : i32
    %c0_i32_1 = arith.constant 0 : i32
    return %c0_i32, %c0_i32_0 : i32, i32
  }
  func.func @transform_5(%arg0: i32) -> (i32, i32) {
    %c0_i32 = arith.constant 0 : i32
    %c0_i32_0 = arith.constant 0 : i32
    %c0_i32_1 = arith.constant 0 : i32
    return %c0_i32, %c0_i32_0 : i32, i32
  }
  func.func @transform_6(%arg0: i32) -> (i32, i32) {
    %c0_i32 = arith.constant 0 : i32
    %c0_i32_0 = arith.constant 0 : i32
    %c0_i32_1 = arith.constant 0 : i32
    return %c0_i32, %c0_i32_0 : i32, i32
  }
  func.func @transform_7(%arg0: i32) -> (i32, i32) {
    %c0_i32 = arith.constant 0 : i32
    %c0_i32_0 = arith.constant 0 : i32
    %c0_i32_1 = arith.constant 0 : i32
    return %c0_i32, %c0_i32_0 : i32, i32
  }
  func.func @transform_8(%arg0: i32) -> (i32, i32) {
    %c0_i32 = arith.constant 0 : i32
    %c0_i32_0 = arith.constant 0 : i32
    %c0_i32_1 = arith.constant 0 : i32
    return %c0_i32, %c0_i32_0 : i32, i32
  }
  func.func @transform_9(%arg0: i32) -> (i32, i32) {
    %c0_i32 = arith.constant 0 : i32
    %c0_i32_0 = arith.constant 0 : i32
    %c0_i32_1 = arith.constant 0 : i32
    return %c0_i32, %c0_i32_0 : i32, i32
  }
  func.func @transform_10(%arg0: i32) -> (i32, i32) {
    %c0_i32 = arith.constant 0 : i32
    %c0_i32_0 = arith.constant 0 : i32
    return %c0_i32, %arg0 : i32, i32
  }
}

</mosaic_0001>

<llo_original>
// kernel: tpu_custom_call.1
$region0: #{tpu_custom_call.1}
  #allocation0 [shape = 'u32[]', space=smem, size = 0x4, offset = 0x4, fixed_abs, tag = 'smem constant byte address 0x4 - core index']
  #allocation1 [shape = 'u32[144,128]{1,0:T(1,128)}', space=vmem, size = 0x12000, scoped, tag = 'internal scratch']
  %s0 = inlined_call_operand.vmem [shape: f32[4,512], index: 0, kind: input, shape index: {}]
  %s1 = inlined_call_operand.vmem [shape: f32[4,512], index: 1, kind: input, shape index: {}]
  %s2 = inlined_call_operand.hbm [shape: f32[4,9], index: 2, kind: input, shape index: {}]
  %s3 = inlined_call_operand.vmem [shape: f32[8,4], index: 3, kind: input, shape index: {}]
  %s4 = inlined_call_operand.vmem [shape: f32[8,1], index: 4, kind: input, shape index: {}]
  %s5 = inlined_call_operand.vmem [shape: f32[8,9], index: 5, kind: input, shape index: {}]
  %s6 = inlined_call_operand.vmem [shape: f32[8,8], index: 6, kind: input, shape index: {}]
  %s7 = inlined_call_operand.vmem [shape: f32[8,1], index: 7, kind: input, shape index: {}]
  %s8 = inlined_call_operand.vmem [shape: f32[8,4], index: 8, kind: input, shape index: {}]
  %s9 = inlined_call_operand.vmem [shape: f32[8,1], index: 9, kind: input, shape index: {}]
  %s10 = inlined_call_operand.hbm [shape: f32[8,512], index: 10, kind: output, shape index: {}]
  %s11 = sld [smem:[#allocation0]]
  $region54: #{tpu_custom_call.1} parent=0
    _
  %s13 = ssub.s32 1, %s11
  %s14 = scalar_select 0, %s13, %s11
  $region1: #{tpu_custom_call.1} parent=0
    #allocation2 [shape = 'u8[2048]{0}', space=vmem, size = 0x800, scoped, tag = 'input window, operand 2, single buffered']
    #allocation3 [shape = 's32[1]{0}', space=sflag, size = 0x4, scoped, tag = 'scoped memory for tpu_custom_call.1']
    #allocation4 [shape = 's32[1]{0}', space=sflag, size = 0x4, scoped, tag = 'scoped memory for tpu_custom_call.1']
    #allocation5 [shape = 'u8[16384]{0}', space=vmem, size = 0x4000, scoped, tag = 'output window, operand 0, single buffered']
    %15 = vsyncpa [#allocation3], 0
    %16 = vsyncpa [#allocation4], 0
    // Predicated region
    $region2: #{tpu_custom_call.1} parent=1 // pred_check
      _
    $region3: #{tpu_custom_call.1} parent=1 // pred_check_branch
      %18 = sbr.rel (0) target = $region5
    $region4: #{tpu_custom_call.1} parent=1 // pred_region
      _
    $region5: #{tpu_custom_call.1} parent=1 // pred_fallthru
      _
    // Predicated region
    $region6: #{tpu_custom_call.1} parent=1 // pred_check
      _
    $region7: #{tpu_custom_call.1} parent=1 // pred_check_branch
      %20 = sbr.rel (0) target = $region9
    $region8: #{tpu_custom_call.1} parent=1 // pred_region
      _
    $region9: #{tpu_custom_call.1} parent=1 // pred_fallthru
      _
    // Predicated region
    $region10: #{tpu_custom_call.1} parent=1 // pred_check
      _
    $region11: #{tpu_custom_call.1} parent=1 // pred_check_branch
      %22 = sbr.rel (0) target = $region13
    $region12: #{tpu_custom_call.1} parent=1 // pred_region
      %s24 = ssub.s32 64, 64
      %25 = vsyncadd [#allocation3], %s24
      %s27 = sshll.u32 [#allocation2], 4
      %s28 = int_to_ptr.vmem [resolvable:$true] %s27
      %30 = dma.hbm_to_vmem [thread:$0]  %s2, 64, %s28, [#allocation3]
    $region13: #{tpu_custom_call.1} parent=1 // pred_fallthru
      _
    // Predicated region
    $region14: #{tpu_custom_call.1} parent=1 // pred_check
      _
    $region15: #{tpu_custom_call.1} parent=1 // pred_check_branch
      %32 = sbr.rel (0) target = $region17
    $region16: #{tpu_custom_call.1} parent=1 // pred_region
      _
    $region17: #{tpu_custom_call.1} parent=1 // pred_fallthru
      _
    // Predicated region
    $region18: #{tpu_custom_call.1} parent=1 // pred_check
      _
    $region19: #{tpu_custom_call.1} parent=1 // pred_check_branch
      %34 = sbr.rel (0) target = $region21
    $region20: #{tpu_custom_call.1} parent=1 // pred_region
      _
    $region21: #{tpu_custom_call.1} parent=1 // pred_fallthru
      _
    // Predicated region
    $region22: #{tpu_custom_call.1} parent=1 // pred_check
      _
    $region23: #{tpu_custom_call.1} parent=1 // pred_check_branch
      %36 = sbr.rel (0) target = $region25
    $region24: #{tpu_custom_call.1} parent=1 // pred_region
      _
    $region25: #{tpu_custom_call.1} parent=1 // pred_fallthru
      _
    // Predicated region
    $region26: #{tpu_custom_call.1} parent=1 // pred_check
      _
    $region27: #{tpu_custom_call.1} parent=1 // pred_check_branch
      %38 = sbr.rel (0) target = $region29
    $region28: #{tpu_custom_call.1} parent=1 // pred_region
      _
    $region29: #{tpu_custom_call.1} parent=1 // pred_fallthru
      _
    // Predicated region
    $region30: #{tpu_custom_call.1} parent=1 // pred_check
      _
    $region31: #{tpu_custom_call.1} parent=1 // pred_check_branch
      %40 = sbr.rel (0) target = $region33
    $region32: #{tpu_custom_call.1} parent=1 // pred_region
      _
    $region33: #{tpu_custom_call.1} parent=1 // pred_fallthru
      _
    // Predicated region
    $region34: #{tpu_custom_call.1} parent=1 // pred_check
      _
    $region35: #{tpu_custom_call.1} parent=1 // pred_check_branch
      %42 = sbr.rel (0) target = $region37
    $region36: #{tpu_custom_call.1} parent=1 // pred_region
      _
    $region37: #{tpu_custom_call.1} parent=1 // pred_fallthru
      _
    // Predicated region
    $region38: #{tpu_custom_call.1} parent=1 // pred_check
      _
    $region39: #{tpu_custom_call.1} parent=1 // pred_check_branch
      %44 = sbr.rel (0) target = $region41
    $region40: #{tpu_custom_call.1} parent=1 // pred_region
      _
    $region41: #{tpu_custom_call.1} parent=1 // pred_fallthru
      _
    // Predicated region
    $region42: #{tpu_custom_call.1} parent=1 // pred_check
      _
    $region43: #{tpu_custom_call.1} parent=1 // pred_check_branch
      %46 = sbr.rel (0) target = $region45
    $region44: #{tpu_custom_call.1} parent=1 // pred_region
      %47 = dma.done [#allocation3], 64
    $region45: #{tpu_custom_call.1} parent=1 // pred_fallthru
      _
    %v48 = vld [vmem:[%s1] sm:$0xff]
    %v49 = vld [vmem:[%s1 + $0x8] sm:$0xff]
    %vm50 = vcmp.gt.f32.partialorder %v48, 0.5
    %vm51 = vcmp.gt.f32.partialorder %v49, 0.5
    %v52 = vld [vmem:[%s0] sm:$0xff]
    %v53 = vld [vmem:[%s0 + $0x8] sm:$0xff]
    %v54 = vld [vmem:[#allocation2] sm:$0xf]
    %v57 = vcombine.high %v52, %v52
    %v58 = vcombine.high %v53, %v53
    %61 = vrot.lane.b32.xlu0 %v52, 1
    %v62 = vpop.permute.xlu0 %61
    %63 = vrot.lane.b32.xlu0 %v57, 1
    %v64 = vpop.permute.xlu0 %63
    %65 = vrot.lane.b32.xlu0 %v53, 1
    %v66 = vpop.permute.xlu0 %65
    %67 = vrot.lane.b32.xlu0 %v58, 1
    %v68 = vpop.permute.xlu0 %67
    %v69 = vlaneseq
    %v70 = vand.u32 %v69, 127
    %vm71 = vcmp.lt.s32.totalorder %v70, 1
    %v72 = vsel %vm71, %v66, %v68
    %v73 = vsel %vm71, %v64, %v66
    %v74 = vsel %vm71, %v62, %v64
    %v75 = vsel %vm71, %v68, %v62
    %v76 = vsel %vm50, 1, 0
    %v77 = vsel %vm51, 1, 0
    %v78 = vlaneseq
    %v79 = vshrl.u32 %v78, 7
    %v80 = vsub.s32 2, %v79
    %v81 = vrot.slane %v76, %v80
    %v82 = vlaneseq
    %v83 = vshrl.u32 %v82, 7
    %v84 = vsub.s32 6, %v83
    %v85 = vrot.slane %v76, %v84
    %v86 = vlaneseq
    %v87 = vshrl.u32 %v86, 7
    %v88 = vsub.s32 2, %v87
    %v89 = vrot.slane %v77, %v88
    %v90 = vlaneseq
    %v91 = vshrl.u32 %v90, 7
    %v92 = vsub.s32 6, %v91
    %v93 = vrot.slane %v77, %v92
    %v94 = vlaneseq
    %v95 = vshrl.u32 %v94, 7
    %v96 = vsub.s32 2, %v95
    %v97 = vrot.slane %v81, %v96
    %v98 = vlaneseq
    %v99 = vshrl.u32 %v98, 7
    %v100 = vsub.s32 2, %v99
    %v101 = vrot.slane %v85, %v100
    %v102 = vlaneseq
    %v103 = vshrl.u32 %v102, 7
    %v104 = vsub.s32 2, %v103
    %v105 = vrot.slane %v89, %v104
    %v106 = vlaneseq
    %v107 = vshrl.u32 %v106, 7
    %v108 = vsub.s32 2, %v107
    %v109 = vrot.slane %v93, %v108
    %vm110 = vcmp.eq.s32.totalorder %v97, 1
    %vm111 = vcmp.eq.s32.totalorder %v101, 1
    %vm112 = vcmp.eq.s32.totalorder %v105, 1
    %vm113 = vcmp.eq.s32.totalorder %v109, 1
    %v114 = vsel %vm110, %v75, 0.0
    %v115 = vsel %vm111, %v74, 0.0
    %v116 = vsel %vm112, %v73, 0.0
    %v117 = vsel %vm113, %v72, 0.0
    %118 = vrot.lane.b32.xlu0 %v52, 127
    %v119 = vpop.permute.xlu0 %118
    %120 = vrot.lane.b32.xlu0 %v57, 127
    %v121 = vpop.permute.xlu0 %120
    %122 = vrot.lane.b32.xlu0 %v53, 127
    %v123 = vpop.permute.xlu0 %122
    %124 = vrot.lane.b32.xlu0 %v58, 127
    %v125 = vpop.permute.xlu0 %124
    %vm126 = vcmp.lt.s32.totalorder %v70, 127
    %v127 = vsel %vm126, %v123, %v125
    %v128 = vsel %vm126, %v121, %v123
    %v129 = vsel %vm126, %v119, %v121
    %v130 = vsel %vm126, %v125, %v119
    %v131 = vlaneseq
    %v132 = vshrl.u32 %v131, 7
    %v133 = vsub.s32 3, %v132
    %v134 = vrot.slane %v76, %v133
    %v135 = vlaneseq
    %v136 = vshrl.u32 %v135, 7
    %v137 = vsub.s32 7, %v136
    %v138 = vrot.slane %v76, %v137
    %v139 = vlaneseq
    %v140 = vshrl.u32 %v139, 7
    %v141 = vsub.s32 3, %v140
    %v142 = vrot.slane %v77, %v141
    %v143 = vlaneseq
    %v144 = vshrl.u32 %v143, 7
    %v145 = vsub.s32 7, %v144
    %v146 = vrot.slane %v77, %v145
    %v147 = vlaneseq
    %v148 = vshrl.u32 %v147, 7
    %v149 = vsub.s32 3, %v148
    %v150 = vrot.slane %v134, %v149
    %v151 = vlaneseq
    %v152 = vshrl.u32 %v151, 7
    %v153 = vsub.s32 3, %v152
    %v154 = vrot.slane %v138, %v153
    %v155 = vlaneseq
    %v156 = vshrl.u32 %v155, 7
    %v157 = vsub.s32 3, %v156
    %v158 = vrot.slane %v142, %v157
    %v159 = vlaneseq
    %v160 = vshrl.u32 %v159, 7
    %v161 = vsub.s32 3, %v160
    %v162 = vrot.slane %v146, %v161
    %vm163 = vcmp.eq.s32.totalorder %v150, 1
    %vm164 = vcmp.eq.s32.totalorder %v154, 1
    %vm165 = vcmp.eq.s32.totalorder %v158, 1
    %vm166 = vcmp.eq.s32.totalorder %v162, 1
    %v167 = vsel %vm163, %v129, 0.0
    %v168 = vsel %vm164, %v128, 0.0
    %v169 = vsel %vm165, %v127, 0.0
    %v170 = vsel %vm166, %v130, 0.0
    %172 = vset.pattern.permute.xlu0 0
    %173 = vperm.xlu0 %172, %v54
    %v174 = vpop.permute.xlu0 %173
    %v176 = vmul.f32 %v114, %v174
    %v177 = vmul.f32 %v115, %v174
    %v178 = vmul.f32 %v116, %v174
    %v179 = vmul.f32 %v117, %v174
    %180 = vset.pattern.permute.xlu0 1
    %181 = vperm.xlu0 %180, %v54
    %v182 = vpop.permute.xlu0 %181
    %v184 = vunpack.c.l.s4 839922192
    %v185 = vunpack.c.0.s8 %v184
    %v186 = vlaneseq
    %v187 = vshrl.u32 %v186, 7
    %v188 = vsub.s32 %v185, %v187
    %v189 = vrot.slane %v182, %v188
    %v191 = vmul.f32 %v52, %v189
    %v192 = vmul.f32 %v53, %v189
    %v195 = vcombine.high %v191, %v191
    %v196 = vcombine.high %v192, %v192
    %v199 = vadd.f32 %v176, %v191
    %v200 = vadd.f32 %v177, %v195
    %v201 = vadd.f32 %v178, %v192
    %v202 = vadd.f32 %v179, %v196
    %203 = vset.pattern.permute.xlu0 2
    %204 = vperm.xlu0 %203, %v54
    %v205 = vpop.permute.xlu0 %204
    %v207 = vmul.f32 %v167, %v205
    %v208 = vmul.f32 %v168, %v205
    %v209 = vmul.f32 %v169, %v205
    %v210 = vmul.f32 %v170, %v205
    %v211 = vadd.f32 %v199, %v207
    %v212 = vadd.f32 %v200, %v208
    %v213 = vadd.f32 %v201, %v209
    %v214 = vadd.f32 %v202, %v210
    %215 = vrot.lane.b32.xlu0 %v211, 16
    %v216 = vpop.permute.xlu0 %215
    %217 = vrot.lane.b32.xlu0 %v212, 16
    %v218 = vpop.permute.xlu0 %217
    %219 = vrot.lane.b32.xlu0 %v213, 16
    %v220 = vpop.permute.xlu0 %219
    %221 = vrot.lane.b32.xlu0 %v214, 16
    %v222 = vpop.permute.xlu0 %221
    %vm223 = vcmp.lt.s32.totalorder %v70, 16
    %v224 = vsel %vm223, %v220, %v222
    %v225 = vsel %vm223, %v218, %v220
    %v226 = vsel %vm223, %v216, %v218
    %v227 = vsel %vm223, %v222, %v216
    %v228 = vlaneseq
    %v229 = vshrl.u32 %v228, 7
    %v230 = vsub.s32 0, %v229
    %v231 = vrot.slane %v76, %v230
    %v232 = vlaneseq
    %v233 = vshrl.u32 %v232, 7
    %v234 = vsub.s32 4, %v233
    %v235 = vrot.slane %v76, %v234
    %v236 = vlaneseq
    %v237 = vshrl.u32 %v236, 7
    %v238 = vsub.s32 0, %v237
    %v239 = vrot.slane %v77, %v238
    %v240 = vlaneseq
    %v241 = vshrl.u32 %v240, 7
    %v242 = vsub.s32 4, %v241
    %v243 = vrot.slane %v77, %v242
    %v244 = vlaneseq
    %v245 = vshrl.u32 %v244, 7
    %v246 = vsub.s32 0, %v245
    %v247 = vrot.slane %v231, %v246
    %v248 = vlaneseq
    %v249 = vshrl.u32 %v248, 7
    %v250 = vsub.s32 0, %v249
    %v251 = vrot.slane %v235, %v250
    %v252 = vlaneseq
    %v253 = vshrl.u32 %v252, 7
    %v254 = vsub.s32 0, %v253
    %v255 = vrot.slane %v239, %v254
    %v256 = vlaneseq
    %v257 = vshrl.u32 %v256, 7
    %v258 = vsub.s32 0, %v257
    %v259 = vrot.slane %v243, %v258
    %vm260 = vcmp.eq.s32.totalorder %v247, 1
    %vm261 = vcmp.eq.s32.totalorder %v251, 1
    %vm262 = vcmp.eq.s32.totalorder %v255, 1
    %vm263 = vcmp.eq.s32.totalorder %v259, 1
    %v264 = vsel %vm260, %v227, 0.0
    %v265 = vsel %vm261, %v226, 0.0
    %v266 = vsel %vm262, %v225, 0.0
    %v267 = vsel %vm263, %v224, 0.0
    %268 = vset.pattern.permute.xlu0 3
    %269 = vperm.xlu0 %268, %v54
    %v270 = vpop.permute.xlu0 %269
    %v272 = vmul.f32 %v114, %v270
    %v273 = vmul.f32 %v115, %v270
    %v274 = vmul.f32 %v116, %v270
    %v275 = vmul.f32 %v117, %v270
    %276 = vset.pattern.permute.xlu0 4
    %277 = vperm.xlu0 %276, %v54
    %v278 = vpop.permute.xlu0 %277
    %v280 = vunpack.c.l.s4 839922192
    %v281 = vunpack.c.0.s8 %v280
    %v282 = vlaneseq
    %v283 = vshrl.u32 %v282, 7
    %v284 = vsub.s32 %v281, %v283
    %v285 = vrot.slane %v278, %v284
    %v287 = vmul.f32 %v52, %v285
    %v288 = vmul.f32 %v53, %v285
    %v291 = vcombine.high %v287, %v287
    %v292 = vcombine.high %v288, %v288
    %v295 = vadd.f32 %v272, %v287
    %v296 = vadd.f32 %v273, %v291
    %v297 = vadd.f32 %v274, %v288
    %v298 = vadd.f32 %v275, %v292
    %299 = vset.pattern.permute.xlu0 5
    %300 = vperm.xlu0 %299, %v54
    %v301 = vpop.permute.xlu0 %300
    %v303 = vmul.f32 %v167, %v301
    %v304 = vmul.f32 %v168, %v301
    %v305 = vmul.f32 %v169, %v301
    %v306 = vmul.f32 %v170, %v301
    %v307 = vadd.f32 %v295, %v303
    %v308 = vadd.f32 %v296, %v304
    %v309 = vadd.f32 %v297, %v305
    %v310 = vadd.f32 %v298, %v306
    %v311 = vadd.f32 %v264, %v307
    %v312 = vadd.f32 %v265, %v308
    %v313 = vadd.f32 %v266, %v309
    %v314 = vadd.f32 %v267, %v310
    %315 = vset.pattern.permute.xlu0 6
    %316 = vperm.xlu0 %315, %v54
    %v317 = vpop.permute.xlu0 %316
    %v319 = vmul.f32 %v114, %v317
    %v320 = vmul.f32 %v115, %v317
    %v321 = vmul.f32 %v116, %v317
    %v322 = vmul.f32 %v117, %v317
    %323 = vset.pattern.permute.xlu0 7
    %324 = vperm.xlu0 %323, %v54
    %v325 = vpop.permute.xlu0 %324
    %v327 = vunpack.c.l.s4 839922192
    %v328 = vunpack.c.0.s8 %v327
    %v329 = vlaneseq
    %v330 = vshrl.u32 %v329, 7
    %v331 = vsub.s32 %v328, %v330
    %v332 = vrot.slane %v325, %v331
    %v334 = vmul.f32 %v52, %v332
    %v335 = vmul.f32 %v53, %v332
    %v338 = vcombine.high %v334, %v334
    %v339 = vcombine.high %v335, %v335
    %v342 = vadd.f32 %v319, %v334
    %v343 = vadd.f32 %v320, %v338
    %v344 = vadd.f32 %v321, %v335
    %v345 = vadd.f32 %v322, %v339
    %346 = vset.pattern.permute.xlu0 8
    %347 = vperm.xlu0 %346, %v54
    %v348 = vpop.permute.xlu0 %347
    %v350 = vmul.f32 %v167, %v348
    %v351 = vmul.f32 %v168, %v348
    %v352 = vmul.f32 %v169, %v348
    %v353 = vmul.f32 %v170, %v348
    %v354 = vadd.f32 %v342, %v350
    %v355 = vadd.f32 %v343, %v351
    %v356 = vadd.f32 %v344, %v352
    %v357 = vadd.f32 %v345, %v353
    %358 = vrot.lane.b32.xlu0 %v354, 112
    %v359 = vpop.permute.xlu0 %358
    %360 = vrot.lane.b32.xlu0 %v355, 112
    %v361 = vpop.permute.xlu0 %360
    %362 = vrot.lane.b32.xlu0 %v356, 112
    %v363 = vpop.permute.xlu0 %362
    %364 = vrot.lane.b32.xlu0 %v357, 112
    %v365 = vpop.permute.xlu0 %364
    %vm366 = vcmp.lt.s32.totalorder %v70, 112
    %v367 = vsel %vm366, %v363, %v365
    %v368 = vsel %vm366, %v361, %v363
    %v369 = vsel %vm366, %v359, %v361
    %v370 = vsel %vm366, %v365, %v359
    %v371 = vlaneseq
    %v372 = vshrl.u32 %v371, 7
    %v373 = vsub.s32 1, %v372
    %v374 = vrot.slane %v76, %v373
    %v375 = vlaneseq
    %v376 = vshrl.u32 %v375, 7
    %v377 = vsub.s32 5, %v376
    %v378 = vrot.slane %v76, %v377
    %v379 = vlaneseq
    %v380 = vshrl.u32 %v379, 7
    %v381 = vsub.s32 1, %v380
    %v382 = vrot.slane %v77, %v381
    %v383 = vlaneseq
    %v384 = vshrl.u32 %v383, 7
    %v385 = vsub.s32 5, %v384
    %v386 = vrot.slane %v77, %v385
    %v387 = vlaneseq
    %v388 = vshrl.u32 %v387, 7
    %v389 = vsub.s32 1, %v388
    %v390 = vrot.slane %v374, %v389
    %v391 = vlaneseq
    %v392 = vshrl.u32 %v391, 7
    %v393 = vsub.s32 1, %v392
    %v394 = vrot.slane %v378, %v393
    %v395 = vlaneseq
    %v396 = vshrl.u32 %v395, 7
    %v397 = vsub.s32 1, %v396
    %v398 = vrot.slane %v382, %v397
    %v399 = vlaneseq
    %v400 = vshrl.u32 %v399, 7
    %v401 = vsub.s32 1, %v400
    %v402 = vrot.slane %v386, %v401
    %vm403 = vcmp.eq.s32.totalorder %v390, 1
    %vm404 = vcmp.eq.s32.totalorder %v394, 1
    %vm405 = vcmp.eq.s32.totalorder %v398, 1
    %vm406 = vcmp.eq.s32.totalorder %v402, 1
    %v407 = vsel %vm403, %v369, 0.0
    %v408 = vsel %vm404, %v368, 0.0
    %v409 = vsel %vm405, %v367, 0.0
    %v410 = vsel %vm406, %v370, 0.0
    %v411 = vadd.f32 %v311, %v407
    %v412 = vadd.f32 %v312, %v408
    %v413 = vadd.f32 %v313, %v409
    %v414 = vadd.f32 %v314, %v410
    %v415 = vld [vmem:[%s3] sm:$0xff]
    %v416 = vld [vmem:[%s4] sm:$0xff]
    %418 = vset.pattern.permute.xlu0 0
    %419 = vperm.xlu0 %418, %v416
    %v420 = vpop.permute.xlu0 %419
    %vm422 = vcmask 31744
    %v424 = vsel %vm422, %v415, 0
    %vm426 = vcmask 1043456
    %v428 = vsel %vm426, %v411, 0
    %v431 = vsel %vm426, %v412, 0
    %v434 = vsel %vm426, %v413, 0
    %v437 = vsel %vm426, %v414, 0
    %439 = vmatprep.subr.mxu0 %v431
    %440 = vmatpush1.msra.mxu0 %v428
    %441 = vmatprep.subr.mxu0 0.0
    %442 = vmatpush1.msra.mxu0 0.0
    %443 = vmatprep.subr.mxu0 0.0
    %444 = vmatpush1.msra.mxu0 0.0
    %445 = vmatprep.subr.mxu0 0.0
    %446 = vmatpush1.msra.mxu0 0.0
    %447 = vmatprep.subr.mxu0 0.0
    %448 = vmatpush1.msra.mxu0 0.0
    %449 = vmatprep.subr.mxu0 0.0
    %450 = vmatpush1.msra.mxu0 0.0
    %451 = vmatprep.subr.mxu0 0.0
    %452 = vmatpush1.msra.mxu0 0.0
    %453 = vmatprep.subr.mxu0 0.0
    %454 = vmatpush1.msra.mxu0 0.0
    %455 = vmatprep.subr.mxu0 0.0
    %456 = vmatpush1.msra.mxu0 0.0
    %457 = vmatprep.subr.mxu0 0.0
    %458 = vmatpush1.msra.mxu0 0.0
    %459 = vmatprep.subr.mxu0 0.0
    %460 = vmatpush1.msra.mxu0 0.0
    %461 = vmatprep.subr.mxu0 0.0
    %462 = vmatpush1.msra.mxu0 0.0
    %463 = vmatprep.subr.mxu0 0.0
    %464 = vmatpush1.msra.mxu0 0.0
    %465 = vmatprep.subr.mxu0 0.0
    %466 = vmatpush1.msra.mxu0 0.0
    %467 = vmatprep.subr.mxu0 0.0
    %468 = vmatpush1.msra.mxu0 0.0
    %469 = vmatprep.subr.mxu0 0.0
    %470 = vmatpush1.msra.mxu0 0.0
    %471 = vmatprep.subr.mxu0 0.0
    %472 = vmatpush1.msra.mxu0 0.0
    %473 = vmatprep.subr.mxu0 0.0
    %474 = vmatpush1.msra.mxu0 0.0
    %475 = vmatprep.subr.mxu0 0.0
    %476 = vmatpush1.msra.mxu0 0.0
    %477 = vmatprep.subr.mxu0 0.0
    %478 = vmatpush1.msra.mxu0 0.0
    %479 = vmatprep.subr.mxu0 0.0
    %480 = vmatpush1.msra.mxu0 0.0
    %481 = vmatprep.subr.mxu0 0.0
    %482 = vmatpush1.msra.mxu0 0.0
    %483 = vmatprep.subr.mxu0 0.0
    %484 = vmatpush1.msra.mxu0 0.0
    %485 = vmatprep.subr.mxu0 0.0
    %486 = vmatpush1.msra.mxu0 0.0
    %487 = vmatprep.subr.mxu0 0.0
    %488 = vmatpush1.msra.mxu0 0.0
    %489 = vmatprep.subr.mxu0 0.0
    %490 = vmatpush1.msra.mxu0 0.0
    %491 = vmatprep.subr.mxu0 0.0
    %492 = vmatpush1.msra.mxu0 0.0
    %493 = vmatprep.subr.mxu0 0.0
    %494 = vmatpush1.msra.mxu0 0.0
    %495 = vmatprep.subr.mxu0 0.0
    %496 = vmatpush1.msra.mxu0 0.0
    %497 = vmatprep.subr.mxu0 0.0
    %498 = vmatpush1.msra.mxu0 0.0
    %499 = vmatprep.subr.mxu0 0.0
    %500 = vmatpush1.msra.mxu0 0.0
    %501 = vmatprep.subr.mxu0 0.0
    %502 = vmatpush1.msra.mxu0 0.0
    %503 = vmatprep.mubr.f32.mxu0 0.0
    %504 = vmatmul.mubr.f32.gmra.mrb[0].mxu0 %v424
    %v505 = vpop.f32.mrb[0].mxu0
    %v506 = vadd.f32 %v420, %v505
    %v507 = vpop.f32.mrb[0].mxu0
    %v508 = vadd.f32 %v420, %v507
    %509 = vdwg.mxu0
    %510 = vmatprep.subr.mxu0 %v437
    %511 = vmatpush1.msra.mxu0 %v434
    %512 = vmatprep.subr.mxu0 0.0
    %513 = vmatpush1.msra.mxu0 0.0
    %514 = vmatprep.subr.mxu0 0.0
    %515 = vmatpush1.msra.mxu0 0.0
    %516 = vmatprep.subr.mxu0 0.0
    %517 = vmatpush1.msra.mxu0 0.0
    %518 = vmatprep.subr.mxu0 0.0
    %519 = vmatpush1.msra.mxu0 0.0
    %520 = vmatprep.subr.mxu0 0.0
    %521 = vmatpush1.msra.mxu0 0.0
    %522 = vmatprep.subr.mxu0 0.0
    %523 = vmatpush1.msra.mxu0 0.0
    %524 = vmatprep.subr.mxu0 0.0
    %525 = vmatpush1.msra.mxu0 0.0
    %526 = vmatprep.subr.mxu0 0.0
    %527 = vmatpush1.msra.mxu0 0.0
    %528 = vmatprep.subr.mxu0 0.0
    %529 = vmatpush1.msra.mxu0 0.0
    %530 = vmatprep.subr.mxu0 0.0
    %531 = vmatpush1.msra.mxu0 0.0
    %532 = vmatprep.subr.mxu0 0.0
    %533 = vmatpush1.msra.mxu0 0.0
    %534 = vmatprep.subr.mxu0 0.0
    %535 = vmatpush1.msra.mxu0 0.0
    %536 = vmatprep.subr.mxu0 0.0
    %537 = vmatpush1.msra.mxu0 0.0
    %538 = vmatprep.subr.mxu0 0.0
    %539 = vmatpush1.msra.mxu0 0.0
    %540 = vmatprep.subr.mxu0 0.0
    %541 = vmatpush1.msra.mxu0 0.0
    %542 = vmatprep.subr.mxu0 0.0
    %543 = vmatpush1.msra.mxu0 0.0
    %544 = vmatprep.subr.mxu0 0.0
    %545 = vmatpush1.msra.mxu0 0.0
    %546 = vmatprep.subr.mxu0 0.0
    %547 = vmatpush1.msra.mxu0 0.0
    %548 = vmatprep.subr.mxu0 0.0
    %549 = vmatpush1.msra.mxu0 0.0
    %550 = vmatprep.subr.mxu0 0.0
    %551 = vmatpush1.msra.mxu0 0.0
    %552 = vmatprep.subr.mxu0 0.0
    %553 = vmatpush1.msra.mxu0 0.0
    %554 = vmatprep.subr.mxu0 0.0
    %555 = vmatpush1.msra.mxu0 0.0
    %556 = vmatprep.subr.mxu0 0.0
    %557 = vmatpush1.msra.mxu0 0.0
    %558 = vmatprep.subr.mxu0 0.0
    %559 = vmatpush1.msra.mxu0 0.0
    %560 = vmatprep.subr.mxu0 0.0
    %561 = vmatpush1.msra.mxu0 0.0
    %562 = vmatprep.subr.mxu0 0.0
    %563 = vmatpush1.msra.mxu0 0.0
    %564 = vmatprep.subr.mxu0 0.0
    %565 = vmatpush1.msra.mxu0 0.0
    %566 = vmatprep.subr.mxu0 0.0
    %567 = vmatpush1.msra.mxu0 0.0
    %568 = vmatprep.subr.mxu0 0.0
    %569 = vmatpush1.msra.mxu0 0.0
    %570 = vmatprep.subr.mxu0 0.0
    %571 = vmatpush1.msra.mxu0 0.0
    %572 = vmatprep.subr.mxu0 0.0
    %573 = vmatpush1.msra.mxu0 0.0
    %574 = vmatprep.mubr.f32.mxu0 0.0
    %575 = vmatmul.mubr.f32.gmra.mrb[0].mxu0 %v424
    %v576 = vpop.f32.mrb[0].mxu0
    %v577 = vadd.f32 %v420, %v576
    %v578 = vpop.f32.mrb[0].mxu0
    %v579 = vadd.f32 %v420, %v578
    %580 = vdwg.mxu0
    %v581 = vmax.f32 %v506, 0.0
    %v582 = vmax.f32 %v508, 0.0
    %v583 = vmax.f32 %v577, 0.0
    %v584 = vmax.f32 %v579, 0.0
    %v585 = vld [vmem:[%s5] sm:$0xff]
    %586 = vrot.lane.b32.xlu0 %v581, 1
    %v587 = vpop.permute.xlu0 %586
    %588 = vrot.lane.b32.xlu0 %v582, 1
    %v589 = vpop.permute.xlu0 %588
    %590 = vrot.lane.b32.xlu0 %v583, 1
    %v591 = vpop.permute.xlu0 %590
    %592 = vrot.lane.b32.xlu0 %v584, 1
    %v593 = vpop.permute.xlu0 %592
    %v594 = vsel %vm71, %v591, %v593
    %v595 = vsel %vm71, %v589, %v591
    %v596 = vsel %vm71, %v587, %v589
    %v597 = vsel %vm71, %v593, %v587
    %v598 = vsel %vm110, %v597, 0.0
    %v599 = vsel %vm111, %v596, 0.0
    %v600 = vsel %vm112, %v595, 0.0
    %v601 = vsel %vm113, %v594, 0.0
    %602 = vrot.lane.b32.xlu0 %v581, 127
    %v603 = vpop.permute.xlu0 %602
    %604 = vrot.lane.b32.xlu0 %v582, 127
    %v605 = vpop.permute.xlu0 %604
    %606 = vrot.lane.b32.xlu0 %v583, 127
    %v607 = vpop.permute.xlu0 %606
    %608 = vrot.lane.b32.xlu0 %v584, 127
    %v609 = vpop.permute.xlu0 %608
    %v610 = vsel %vm126, %v607, %v609
    %v611 = vsel %vm126, %v605, %v607
    %v612 = vsel %vm126, %v603, %v605
    %v613 = vsel %vm126, %v609, %v603
    %v614 = vsel %vm163, %v612, 0.0
    %v615 = vsel %vm164, %v611, 0.0
    %v616 = vsel %vm165, %v610, 0.0
    %v617 = vsel %vm166, %v613, 0.0
    %619 = vset.pattern.permute.xlu0 0
    %620 = vperm.xlu0 %619, %v585
    %v621 = vpop.permute.xlu0 %620
    %v623 = vmul.f32 %v598, %v621
    %v624 = vmul.f32 %v599, %v621
    %v625 = vmul.f32 %v600, %v621
    %v626 = vmul.f32 %v601, %v621
    %627 = vset.pattern.permute.xlu0 1
    %628 = vperm.xlu0 %627, %v585
    %v629 = vpop.permute.xlu0 %628
    %v631 = vmul.f32 %v581, %v629
    %v632 = vmul.f32 %v582, %v629
    %v633 = vmul.f32 %v583, %v629
    %v634 = vmul.f32 %v584, %v629
    %v635 = vadd.f32 %v623, %v631
    %v636 = vadd.f32 %v624, %v632
    %v637 = vadd.f32 %v625, %v633
    %v638 = vadd.f32 %v626, %v634
    %639 = vset.pattern.permute.xlu0 2
    %640 = vperm.xlu0 %639, %v585
    %v641 = vpop.permute.xlu0 %640
    %v643 = vmul.f32 %v614, %v641
    %v644 = vmul.f32 %v615, %v641
    %v645 = vmul.f32 %v616, %v641
    %v646 = vmul.f32 %v617, %v641
    %v647 = vadd.f32 %v635, %v643
    %v648 = vadd.f32 %v636, %v644
    %v649 = vadd.f32 %v637, %v645
    %v650 = vadd.f32 %v638, %v646
    %651 = vrot.lane.b32.xlu0 %v647, 16
    %v652 = vpop.permute.xlu0 %651
    %653 = vrot.lane.b32.xlu0 %v648, 16
    %v654 = vpop.permute.xlu0 %653
    %655 = vrot.lane.b32.xlu0 %v649, 16
    %v656 = vpop.permute.xlu0 %655
    %657 = vrot.lane.b32.xlu0 %v650, 16
    %v658 = vpop.permute.xlu0 %657
    %v659 = vsel %vm223, %v656, %v658
    %v660 = vsel %vm223, %v654, %v656
    %v661 = vsel %vm223, %v652, %v654
    %v662 = vsel %vm223, %v658, %v652
    %v663 = vsel %vm260, %v662, 0.0
    %v664 = vsel %vm261, %v661, 0.0
    %v665 = vsel %vm262, %v660, 0.0
    %v666 = vsel %vm263, %v659, 0.0
    %667 = vset.pattern.permute.xlu0 3
    %668 = vperm.xlu0 %667, %v585
    %v669 = vpop.permute.xlu0 %668
    %v671 = vmul.f32 %v598, %v669
    %v672 = vmul.f32 %v599, %v669
    %v673 = vmul.f32 %v600, %v669
    %v674 = vmul.f32 %v601, %v669
    %675 = vset.pattern.permute.xlu0 4
    %676 = vperm.xlu0 %675, %v585
    %v677 = vpop.permute.xlu0 %676
    %v679 = vmul.f32 %v581, %v677
    %v680 = vmul.f32 %v582, %v677
    %v681 = vmul.f32 %v583, %v677
    %v682 = vmul.f32 %v584, %v677
    %v683 = vadd.f32 %v671, %v679
    %v684 = vadd.f32 %v672, %v680
    %v685 = vadd.f32 %v673, %v681
    %v686 = vadd.f32 %v674, %v682
    %687 = vset.pattern.permute.xlu0 5
    %688 = vperm.xlu0 %687, %v585
    %v689 = vpop.permute.xlu0 %688
    %v691 = vmul.f32 %v614, %v689
    %v692 = vmul.f32 %v615, %v689
    %v693 = vmul.f32 %v616, %v689
    %v694 = vmul.f32 %v617, %v689
    %v695 = vadd.f32 %v683, %v691
    %v696 = vadd.f32 %v684, %v692
    %v697 = vadd.f32 %v685, %v693
    %v698 = vadd.f32 %v686, %v694
    %v699 = vadd.f32 %v663, %v695
    %v700 = vadd.f32 %v664, %v696
    %v701 = vadd.f32 %v665, %v697
    %v702 = vadd.f32 %v666, %v698
    %703 = vset.pattern.permute.xlu0 6
    %704 = vperm.xlu0 %703, %v585
    %v705 = vpop.permute.xlu0 %704
    %v707 = vmul.f32 %v598, %v705
    %v708 = vmul.f32 %v599, %v705
    %v709 = vmul.f32 %v600, %v705
    %v710 = vmul.f32 %v601, %v705
    %711 = vset.pattern.permute.xlu0 7
    %712 = vperm.xlu0 %711, %v585
    %v713 = vpop.permute.xlu0 %712
    %v715 = vmul.f32 %v581, %v713
    %v716 = vmul.f32 %v582, %v713
    %v717 = vmul.f32 %v583, %v713
    %v718 = vmul.f32 %v584, %v713
    %v719 = vadd.f32 %v707, %v715
    %v720 = vadd.f32 %v708, %v716
    %v721 = vadd.f32 %v709, %v717
    %v722 = vadd.f32 %v710, %v718
    %723 = vset.pattern.permute.xlu0 8
    %724 = vperm.xlu0 %723, %v585
    %v725 = vpop.permute.xlu0 %724
    %v727 = vmul.f32 %v614, %v725
    %v728 = vmul.f32 %v615, %v725
    %v729 = vmul.f32 %v616, %v725
    %v730 = vmul.f32 %v617, %v725
    %v731 = vadd.f32 %v719, %v727
    %v732 = vadd.f32 %v720, %v728
    %v733 = vadd.f32 %v721, %v729
    %v734 = vadd.f32 %v722, %v730
    %735 = vrot.lane.b32.xlu0 %v731, 112
    %v736 = vpop.permute.xlu0 %735
    %737 = vrot.lane.b32.xlu0 %v732, 112
    %v738 = vpop.permute.xlu0 %737
    %739 = vrot.lane.b32.xlu0 %v733, 112
    %v740 = vpop.permute.xlu0 %739
    %741 = vrot.lane.b32.xlu0 %v734, 112
    %v742 = vpop.permute.xlu0 %741
    %v743 = vsel %vm366, %v740, %v742
    %v744 = vsel %vm366, %v738, %v740
    %v745 = vsel %vm366, %v736, %v738
    %v746 = vsel %vm366, %v742, %v736
    %v747 = vsel %vm403, %v745, 0.0
    %v748 = vsel %vm404, %v744, 0.0
    %v749 = vsel %vm405, %v743, 0.0
    %v750 = vsel %vm406, %v746, 0.0
    %v751 = vadd.f32 %v699, %v747
    %v752 = vadd.f32 %v700, %v748
    %v753 = vadd.f32 %v701, %v749
    %v754 = vadd.f32 %v702, %v750
    %v755 = vld [vmem:[%s6] sm:$0xff]
    %v756 = vld [vmem:[%s7] sm:$0xff]
    %758 = vset.pattern.permute.xlu0 0
    %759 = vperm.xlu0 %758, %v756
    %v760 = vpop.permute.xlu0 %759
    %vm762 = vcmask 64512
    %v764 = vsel %vm762, %v755, 0
    %766 = vmatprep.subr.mxu0 %v752
    %767 = vmatpush1.msra.mxu0 %v751
    %768 = vmatprep.subr.mxu0 0.0
    %769 = vmatpush1.msra.mxu0 0.0
    %770 = vmatprep.subr.mxu0 0.0
    %771 = vmatpush1.msra.mxu0 0.0
    %772 = vmatprep.subr.mxu0 0.0
    %773 = vmatpush1.msra.mxu0 0.0
    %774 = vmatprep.subr.mxu0 0.0
    %775 = vmatpush1.msra.mxu0 0.0
    %776 = vmatprep.subr.mxu0 0.0
    %777 = vmatpush1.msra.mxu0 0.0
    %778 = vmatprep.subr.mxu0 0.0
    %779 = vmatpush1.msra.mxu0 0.0
    %780 = vmatprep.subr.mxu0 0.0
    %781 = vmatpush1.msra.mxu0 0.0
    %782 = vmatprep.subr.mxu0 0.0
    %783 = vmatpush1.msra.mxu0 0.0
    %784 = vmatprep.subr.mxu0 0.0
    %785 = vmatpush1.msra.mxu0 0.0
    %786 = vmatprep.subr.mxu0 0.0
    %787 = vmatpush1.msra.mxu0 0.0
    %788 = vmatprep.subr.mxu0 0.0
    %789 = vmatpush1.msra.mxu0 0.0
    %790 = vmatprep.subr.mxu0 0.0
    %791 = vmatpush1.msra.mxu0 0.0
    %792 = vmatprep.subr.mxu0 0.0
    %793 = vmatpush1.msra.mxu0 0.0
    %794 = vmatprep.subr.mxu0 0.0
    %795 = vmatpush1.msra.mxu0 0.0
    %796 = vmatprep.subr.mxu0 0.0
    %797 = vmatpush1.msra.mxu0 0.0
    %798 = vmatprep.subr.mxu0 0.0
    %799 = vmatpush1.msra.mxu0 0.0
    %800 = vmatprep.subr.mxu0 0.0
    %801 = vmatpush1.msra.mxu0 0.0
    %802 = vmatprep.subr.mxu0 0.0
    %803 = vmatpush1.msra.mxu0 0.0
    %804 = vmatprep.subr.mxu0 0.0
    %805 = vmatpush1.msra.mxu0 0.0
    %806 = vmatprep.subr.mxu0 0.0
    %807 = vmatpush1.msra.mxu0 0.0
    %808 = vmatprep.subr.mxu0 0.0
    %809 = vmatpush1.msra.mxu0 0.0
    %810 = vmatprep.subr.mxu0 0.0
    %811 = vmatpush1.msra.mxu0 0.0
    %812 = vmatprep.subr.mxu0 0.0
    %813 = vmatpush1.msra.mxu0 0.0
    %814 = vmatprep.subr.mxu0 0.0
    %815 = vmatpush1.msra.mxu0 0.0
    %816 = vmatprep.subr.mxu0 0.0
    %817 = vmatpush1.msra.mxu0 0.0
    %818 = vmatprep.subr.mxu0 0.0
    %819 = vmatpush1.msra.mxu0 0.0
    %820 = vmatprep.subr.mxu0 0.0
    %821 = vmatpush1.msra.mxu0 0.0
    %822 = vmatprep.subr.mxu0 0.0
    %823 = vmatpush1.msra.mxu0 0.0
    %824 = vmatprep.subr.mxu0 0.0
    %825 = vmatpush1.msra.mxu0 0.0
    %826 = vmatprep.subr.mxu0 0.0
    %827 = vmatpush1.msra.mxu0 0.0
    %828 = vmatprep.subr.mxu0 0.0
    %829 = vmatpush1.msra.mxu0 0.0
    %830 = vmatprep.mubr.f32.mxu0 0.0
    %831 = vmatmul.mubr.f32.gmra.mrb[0].mxu0 %v764
    %v832 = vpop.f32.mrb[0].mxu0
    %v833 = vadd.f32 %v760, %v832
    %v834 = vpop.f32.mrb[0].mxu0
    %v835 = vadd.f32 %v760, %v834
    %836 = vdwg.mxu0
    %837 = vmatprep.subr.mxu0 %v754
    %838 = vmatpush1.msra.mxu0 %v753
    %839 = vmatprep.subr.mxu0 0.0
    %840 = vmatpush1.msra.mxu0 0.0
    %841 = vmatprep.subr.mxu0 0.0
    %842 = vmatpush1.msra.mxu0 0.0
    %843 = vmatprep.subr.mxu0 0.0
    %844 = vmatpush1.msra.mxu0 0.0
    %845 = vmatprep.subr.mxu0 0.0
    %846 = vmatpush1.msra.mxu0 0.0
    %847 = vmatprep.subr.mxu0 0.0
    %848 = vmatpush1.msra.mxu0 0.0
    %849 = vmatprep.subr.mxu0 0.0
    %850 = vmatpush1.msra.mxu0 0.0
    %851 = vmatprep.subr.mxu0 0.0
    %852 = vmatpush1.msra.mxu0 0.0
    %853 = vmatprep.subr.mxu0 0.0
    %854 = vmatpush1.msra.mxu0 0.0
    %855 = vmatprep.subr.mxu0 0.0
    %856 = vmatpush1.msra.mxu0 0.0
    %857 = vmatprep.subr.mxu0 0.0
    %858 = vmatpush1.msra.mxu0 0.0
    %859 = vmatprep.subr.mxu0 0.0
    %860 = vmatpush1.msra.mxu0 0.0
    %861 = vmatprep.subr.mxu0 0.0
    %862 = vmatpush1.msra.mxu0 0.0
    %863 = vmatprep.subr.mxu0 0.0
    %864 = vmatpush1.msra.mxu0 0.0
    %865 = vmatprep.subr.mxu0 0.0
    %866 = vmatpush1.msra.mxu0 0.0
    %867 = vmatprep.subr.mxu0 0.0
    %868 = vmatpush1.msra.mxu0 0.0
    %869 = vmatprep.subr.mxu0 0.0
    %870 = vmatpush1.msra.mxu0 0.0
    %871 = vmatprep.subr.mxu0 0.0
    %872 = vmatpush1.msra.mxu0 0.0
    %873 = vmatprep.subr.mxu0 0.0
    %874 = vmatpush1.msra.mxu0 0.0
    %875 = vmatprep.subr.mxu0 0.0
    %876 = vmatpush1.msra.mxu0 0.0
    %877 = vmatprep.subr.mxu0 0.0
    %878 = vmatpush1.msra.mxu0 0.0
    %879 = vmatprep.subr.mxu0 0.0
    %880 = vmatpush1.msra.mxu0 0.0
    %881 = vmatprep.subr.mxu0 0.0
    %882 = vmatpush1.msra.mxu0 0.0
    %883 = vmatprep.subr.mxu0 0.0
    %884 = vmatpush1.msra.mxu0 0.0
    %885 = vmatprep.subr.mxu0 0.0
    %886 = vmatpush1.msra.mxu0 0.0
    %887 = vmatprep.subr.mxu0 0.0
    %888 = vmatpush1.msra.mxu0 0.0
    %889 = vmatprep.subr.mxu0 0.0
    %890 = vmatpush1.msra.mxu0 0.0
    %891 = vmatprep.subr.mxu0 0.0
    %892 = vmatpush1.msra.mxu0 0.0
    %893 = vmatprep.subr.mxu0 0.0
    %894 = vmatpush1.msra.mxu0 0.0
    %895 = vmatprep.subr.mxu0 0.0
    %896 = vmatpush1.msra.mxu0 0.0
    %897 = vmatprep.subr.mxu0 0.0
    %898 = vmatpush1.msra.mxu0 0.0
    %899 = vmatprep.subr.mxu0 0.0
    %900 = vmatpush1.msra.mxu0 0.0
    %901 = vmatprep.mubr.f32.mxu0 0.0
    %902 = vmatmul.mubr.f32.gmra.mrb[0].mxu0 %v764
    %v903 = vpop.f32.mrb[0].mxu0
    %v904 = vadd.f32 %v760, %v903
    %v905 = vpop.f32.mrb[0].mxu0
    %v906 = vadd.f32 %v760, %v905
    %907 = vdwg.mxu0
    %908 = vrot.lane.b32.xlu0 %v833, 1
    %v909 = vpop.permute.xlu0 %908
    %910 = vrot.lane.b32.xlu0 %v835, 1
    %v911 = vpop.permute.xlu0 %910
    %912 = vrot.lane.b32.xlu0 %v904, 1
    %v913 = vpop.permute.xlu0 %912
    %914 = vrot.lane.b32.xlu0 %v906, 1
    %v915 = vpop.permute.xlu0 %914
    %v916 = vsel %vm71, %v913, %v915
    %v917 = vsel %vm71, %v911, %v913
    %v918 = vsel %vm71, %v909, %v911
    %v919 = vsel %vm71, %v915, %v909
    %v920 = vsel %vm110, %v919, -inf
    %v921 = vsel %vm111, %v918, -inf
    %v922 = vsel %vm112, %v917, -inf
    %v923 = vsel %vm113, %v916, -inf
    %924 = vrot.lane.b32.xlu0 %v833, 127
    %v925 = vpop.permute.xlu0 %924
    %926 = vrot.lane.b32.xlu0 %v835, 127
    %v927 = vpop.permute.xlu0 %926
    %928 = vrot.lane.b32.xlu0 %v904, 127
    %v929 = vpop.permute.xlu0 %928
    %930 = vrot.lane.b32.xlu0 %v906, 127
    %v931 = vpop.permute.xlu0 %930
    %v932 = vsel %vm126, %v929, %v931
    %v933 = vsel %vm126, %v927, %v929
    %v934 = vsel %vm126, %v925, %v927
    %v935 = vsel %vm126, %v931, %v925
    %v936 = vsel %vm163, %v934, -inf
    %v937 = vsel %vm164, %v933, -inf
    %v938 = vsel %vm165, %v932, -inf
    %v939 = vsel %vm166, %v935, -inf
    %v940 = vmax.f32 %v920, %v936
    %v941 = vmax.f32 %v921, %v937
    %v942 = vmax.f32 %v922, %v938
    %v943 = vmax.f32 %v923, %v939
    %v944 = vmax.f32 %v940, %v833
    %v945 = vmax.f32 %v941, %v835
    %v946 = vmax.f32 %v942, %v904
    %v947 = vmax.f32 %v943, %v906
    %948 = vrot.lane.b32.xlu0 %v944, 16
    %v949 = vpop.permute.xlu0 %948
    %950 = vrot.lane.b32.xlu0 %v945, 16
    %v951 = vpop.permute.xlu0 %950
    %952 = vrot.lane.b32.xlu0 %v946, 16
    %v953 = vpop.permute.xlu0 %952
    %954 = vrot.lane.b32.xlu0 %v947, 16
    %v955 = vpop.permute.xlu0 %954
    %v956 = vsel %vm223, %v953, %v955
    %v957 = vsel %vm223, %v951, %v953
    %v958 = vsel %vm223, %v949, %v951
    %v959 = vsel %vm223, %v955, %v949
    %v960 = vsel %vm260, %v959, -inf
    %v961 = vsel %vm261, %v958, -inf
    %v962 = vsel %vm262, %v957, -inf
    %v963 = vsel %vm263, %v956, -inf
    %964 = vrot.lane.b32.xlu0 %v944, 112
    %v965 = vpop.permute.xlu0 %964
    %966 = vrot.lane.b32.xlu0 %v945, 112
    %v967 = vpop.permute.xlu0 %966
    %968 = vrot.lane.b32.xlu0 %v946, 112
    %v969 = vpop.permute.xlu0 %968
    %970 = vrot.lane.b32.xlu0 %v947, 112
    %v971 = vpop.permute.xlu0 %970
    %v972 = vsel %vm366, %v969, %v971
    %v973 = vsel %vm366, %v967, %v969
    %v974 = vsel %vm366, %v965, %v967
    %v975 = vsel %vm366, %v971, %v965
    %v976 = vsel %vm403, %v974, -inf
    %v977 = vsel %vm404, %v973, -inf
    %v978 = vsel %vm405, %v972, -inf
    %v979 = vsel %vm406, %v975, -inf
    %v980 = vmax.f32 %v960, %v976
    %v981 = vmax.f32 %v961, %v977
    %v982 = vmax.f32 %v962, %v978
    %v983 = vmax.f32 %v963, %v979
    %v984 = vmax.f32 %v980, %v944
    %v985 = vmax.f32 %v981, %v945
    %v986 = vmax.f32 %v982, %v946
    %v987 = vmax.f32 %v983, %v947
    %v988 = vld [vmem:[%s8] sm:$0xff]
    %v989 = vld [vmem:[%s9] sm:$0xff]
    %991 = vset.pattern.permute.xlu0 0
    %992 = vperm.xlu0 %991, %v989
    %v993 = vpop.permute.xlu0 %992
    %v996 = vsel %vm422, %v988, 0
    %v998 = vsel %vm426, %v52, 0
    %v1000 = vsel %vm426, %v57, 0
    %v1002 = vsel %vm426, %v53, 0
    %v1004 = vsel %vm426, %v58, 0
    %1006 = vmatprep.subr.mxu0 %v1000
    %1007 = vmatpush1.msra.mxu0 %v998
    %1008 = vmatprep.subr.mxu0 0.0
    %1009 = vmatpush1.msra.mxu0 0.0
    %1010 = vmatprep.subr.mxu0 0.0
    %1011 = vmatpush1.msra.mxu0 0.0
    %1012 = vmatprep.subr.mxu0 0.0
    %1013 = vmatpush1.msra.mxu0 0.0
    %1014 = vmatprep.subr.mxu0 0.0
    %1015 = vmatpush1.msra.mxu0 0.0
    %1016 = vmatprep.subr.mxu0 0.0
    %1017 = vmatpush1.msra.mxu0 0.0
    %1018 = vmatprep.subr.mxu0 0.0
    %1019 = vmatpush1.msra.mxu0 0.0
    %1020 = vmatprep.subr.mxu0 0.0
    %1021 = vmatpush1.msra.mxu0 0.0
    %1022 = vmatprep.subr.mxu0 0.0
    %1023 = vmatpush1.msra.mxu0 0.0
    %1024 = vmatprep.subr.mxu0 0.0
    %1025 = vmatpush1.msra.mxu0 0.0
    %1026 = vmatprep.subr.mxu0 0.0
    %1027 = vmatpush1.msra.mxu0 0.0
    %1028 = vmatprep.subr.mxu0 0.0
    %1029 = vmatpush1.msra.mxu0 0.0
    %1030 = vmatprep.subr.mxu0 0.0
    %1031 = vmatpush1.msra.mxu0 0.0
    %1032 = vmatprep.subr.mxu0 0.0
    %1033 = vmatpush1.msra.mxu0 0.0
    %1034 = vmatprep.subr.mxu0 0.0
    %1035 = vmatpush1.msra.mxu0 0.0
    %1036 = vmatprep.subr.mxu0 0.0
    %1037 = vmatpush1.msra.mxu0 0.0
    %1038 = vmatprep.subr.mxu0 0.0
    %1039 = vmatpush1.msra.mxu0 0.0
    %1040 = vmatprep.subr.mxu0 0.0
    %1041 = vmatpush1.msra.mxu0 0.0
    %1042 = vmatprep.subr.mxu0 0.0
    %1043 = vmatpush1.msra.mxu0 0.0
    %1044 = vmatprep.subr.mxu0 0.0
    %1045 = vmatpush1.msra.mxu0 0.0
    %1046 = vmatprep.subr.mxu0 0.0
    %1047 = vmatpush1.msra.mxu0 0.0
    %1048 = vmatprep.subr.mxu0 0.0
    %1049 = vmatpush1.msra.mxu0 0.0
    %1050 = vmatprep.subr.mxu0 0.0
    %1051 = vmatpush1.msra.mxu0 0.0
    %1052 = vmatprep.subr.mxu0 0.0
    %1053 = vmatpush1.msra.mxu0 0.0
    %1054 = vmatprep.subr.mxu0 0.0
    %1055 = vmatpush1.msra.mxu0 0.0
    %1056 = vmatprep.subr.mxu0 0.0
    %1057 = vmatpush1.msra.mxu0 0.0
    %1058 = vmatprep.subr.mxu0 0.0
    %1059 = vmatpush1.msra.mxu0 0.0
    %1060 = vmatprep.subr.mxu0 0.0
    %1061 = vmatpush1.msra.mxu0 0.0
    %1062 = vmatprep.subr.mxu0 0.0
    %1063 = vmatpush1.msra.mxu0 0.0
    %1064 = vmatprep.subr.mxu0 0.0
    %1065 = vmatpush1.msra.mxu0 0.0
    %1066 = vmatprep.subr.mxu0 0.0
    %1067 = vmatpush1.msra.mxu0 0.0
    %1068 = vmatprep.subr.mxu0 0.0
    %1069 = vmatpush1.msra.mxu0 0.0
    %1070 = vmatprep.mubr.f32.mxu0 0.0
    %1071 = vmatmul.mubr.f32.gmra.mrb[0].mxu0 %v996
    %v1072 = vpop.f32.mrb[0].mxu0
    %v1073 = vadd.f32 %v993, %v1072
    %v1074 = vpop.f32.mrb[0].mxu0
    %v1075 = vadd.f32 %v993, %v1074
    %1076 = vdwg.mxu0
    %1077 = vmatprep.subr.mxu0 %v1004
    %1078 = vmatpush1.msra.mxu0 %v1002
    %1079 = vmatprep.subr.mxu0 0.0
    %1080 = vmatpush1.msra.mxu0 0.0
    %1081 = vmatprep.subr.mxu0 0.0
    %1082 = vmatpush1.msra.mxu0 0.0
    %1083 = vmatprep.subr.mxu0 0.0
    %1084 = vmatpush1.msra.mxu0 0.0
    %1085 = vmatprep.subr.mxu0 0.0
    %1086 = vmatpush1.msra.mxu0 0.0
    %1087 = vmatprep.subr.mxu0 0.0
    %1088 = vmatpush1.msra.mxu0 0.0
    %1089 = vmatprep.subr.mxu0 0.0
    %1090 = vmatpush1.msra.mxu0 0.0
    %1091 = vmatprep.subr.mxu0 0.0
    %1092 = vmatpush1.msra.mxu0 0.0
    %1093 = vmatprep.subr.mxu0 0.0
    %1094 = vmatpush1.msra.mxu0 0.0
    %1095 = vmatprep.subr.mxu0 0.0
    %1096 = vmatpush1.msra.mxu0 0.0
    %1097 = vmatprep.subr.mxu0 0.0
    %1098 = vmatpush1.msra.mxu0 0.0
    %1099 = vmatprep.subr.mxu0 0.0
    %1100 = vmatpush1.msra.mxu0 0.0
    %1101 = vmatprep.subr.mxu0 0.0
    %1102 = vmatpush1.msra.mxu0 0.0
    %1103 = vmatprep.subr.mxu0 0.0
    %1104 = vmatpush1.msra.mxu0 0.0
    %1105 = vmatprep.subr.mxu0 0.0
    %1106 = vmatpush1.msra.mxu0 0.0
    %1107 = vmatprep.subr.mxu0 0.0
    %1108 = vmatpush1.msra.mxu0 0.0
    %1109 = vmatprep.subr.mxu0 0.0
    %1110 = vmatpush1.msra.mxu0 0.0
    %1111 = vmatprep.subr.mxu0 0.0
    %1112 = vmatpush1.msra.mxu0 0.0
    %1113 = vmatprep.subr.mxu0 0.0
    %1114 = vmatpush1.msra.mxu0 0.0
    %1115 = vmatprep.subr.mxu0 0.0
    %1116 = vmatpush1.msra.mxu0 0.0
    %1117 = vmatprep.subr.mxu0 0.0
    %1118 = vmatpush1.msra.mxu0 0.0
    %1119 = vmatprep.subr.mxu0 0.0
    %1120 = vmatpush1.msra.mxu0 0.0
    %1121 = vmatprep.subr.mxu0 0.0
    %1122 = vmatpush1.msra.mxu0 0.0
    %1123 = vmatprep.subr.mxu0 0.0
    %1124 = vmatpush1.msra.mxu0 0.0
    %1125 = vmatprep.subr.mxu0 0.0
    %1126 = vmatpush1.msra.mxu0 0.0
    %1127 = vmatprep.subr.mxu0 0.0
    %1128 = vmatpush1.msra.mxu0 0.0
    %1129 = vmatprep.subr.mxu0 0.0
    %1130 = vmatpush1.msra.mxu0 0.0
    %1131 = vmatprep.subr.mxu0 0.0
    %1132 = vmatpush1.msra.mxu0 0.0
    %1133 = vmatprep.subr.mxu0 0.0
    %1134 = vmatpush1.msra.mxu0 0.0
    %1135 = vmatprep.subr.mxu0 0.0
    %1136 = vmatpush1.msra.mxu0 0.0
    %1137 = vmatprep.subr.mxu0 0.0
    %1138 = vmatpush1.msra.mxu0 0.0
    %1139 = vmatprep.subr.mxu0 0.0
    %1140 = vmatpush1.msra.mxu0 0.0
    %1141 = vmatprep.mubr.f32.mxu0 0.0
    %1142 = vmatmul.mubr.f32.gmra.mrb[0].mxu0 %v996
    %v1143 = vpop.f32.mrb[0].mxu0
    %v1144 = vadd.f32 %v993, %v1143
    %v1145 = vpop.f32.mrb[0].mxu0
    %v1146 = vadd.f32 %v993, %v1145
    %1147 = vdwg.mxu0
    %v1148 = vadd.f32 %v984, %v1073
    %v1149 = vadd.f32 %v985, %v1075
    %v1150 = vadd.f32 %v986, %v1144
    %v1151 = vadd.f32 %v987, %v1146
    %1152 = vst [vmem:[#allocation5] sm:$0xff] %v1148
    %1153 = vst [vmem:[#allocation5 + $0x8] sm:$0xff] %v1149
    %1154 = vst [vmem:[#allocation5 + $0x10] sm:$0xff] %v1150
    %1155 = vst [vmem:[#allocation5 + $0x18] sm:$0xff] %v1151
    // Predicated region
    $region46: #{tpu_custom_call.1} parent=1 // pred_check
      _
    $region47: #{tpu_custom_call.1} parent=1 // pred_check_branch
      %1157 = sbr.rel (0) target = $region49
    $region48: #{tpu_custom_call.1} parent=1 // pred_region
      %s1159 = ssub.s32 512, 512
      %1160 = vsyncadd [#allocation4], %s1159
      %s1162 = sshll.u32 [#allocation5], 4
      %s1163 = int_to_ptr.vmem [resolvable:$true] %s1162
      %1165 = dma.vmem_to_hbm [thread:$0]  %s1163, 512, %s10, [#allocation4]
    $region49: #{tpu_custom_call.1} parent=1 // pred_fallthru
      _
    // Predicated region
    $region50: #{tpu_custom_call.1} parent=1 // pred_check
      _
    $region51: #{tpu_custom_call.1} parent=1 // pred_check_branch
      %1167 = sbr.rel (0) target = $region53
    $region52: #{tpu_custom_call.1} parent=1 // pred_region
      %1168 = dma.done [#allocation4], 512
    $region53: #{tpu_custom_call.1} parent=1 // pred_fallthru
      _
    %1169 = vsyncpa [#allocation3], 1
    %1170 = vsyncpa [#allocation4], 1

</llo_original>
